<compile_context>
chip_gen: v5e
topology: v5e:2x2
jax: 0.10.0
libtpu: 0.0.40
codegen_flags: <defaults>
</compile_context>

<pallas_src>
import math

import jax
import jax.numpy as jnp
from jax.experimental import pallas as pl
from jax.experimental.pallas import tpu as pltpu  # noqa: F401  (TPU backend)

# -------------------- module-consistent (small) config --------------------
FEAT_DIM = 4
MAX_LEN = 8            # seq_length == max_len (output layer flattens S*d_model)
D_MODEL = 32
N_HEADS = 4
NUM_LAYERS = 2
DIM_FF = 64
NUM_CLASSES = 3
BATCH = 2
HEAD_DIM = D_MODEL // N_HEADS
BN_EPS = 1e-5
SQRT1_2 = 0.7071067811865475
C_PAD = 128            # pad classifier output to a full 128-lane vreg
NEG_BIG = 1e30         # finite "minus infinity" for key padding


def _gelu(x):
    # exact (erf-based) GELU == torch.nn.functional.gelu default
    return 0.5 * x * (1.0 + jax.lax.erf(x * SQRT1_2))


# ------------------------------ fused kernel -------------------------------
def _fused_forward_kernel(x_ref, keep_ref, keep_col_ref,
                          proj_w_ref, proj_b_ref, pe_ref,
                          w_qkv_ref, b_qkv_ref, w_ao_ref, b_ao_ref,
                          bn1_s_ref, bn1_b_ref,
                          w_ff1_ref, b_ff1_ref, w_ff2_ref, b_ff2_ref,
                          bn2_s_ref, bn2_b_ref,
                          out_w_ref, out_b_ref,
                          o_ref):
    B, S, F = x_ref.shape
    E = proj_w_ref.shape[1]
    H = N_HEADS
    dh = E // H
    n_layers = w_qkv_ref.shape[0]
    scale = 1.0 / math.sqrt(dh)

    keep = keep_ref[...]                         # (B, S): 1.0 keep / 0.0 pad
    key_bias = (keep - 1.0) * NEG_BIG            # (B, S): 0 keep / -1e30 pad

    # ---- project_inp(X) * sqrt(d_model) + fixed positional encoding ----
    x = x_ref[...].reshape(B * S, F)
    src = jnp.dot(x, proj_w_ref[...], preferred_element_type=jnp.float32)
    src = (src + proj_b_ref[...]) * math.sqrt(E) + pe_ref[...]   # (B*S, E)
    # TODO(synk): dropout layers (pos_enc / dropout / dropout1/2) are identity
    # at inference; training-time dropout & batch-stat BatchNorm not implemented.

    for l in range(n_layers):
        # ---- multi-head self-attention (torch MultiheadAttention, eval) ----
        qkv = jnp.dot(src, w_qkv_ref[l],
                      preferred_element_type=jnp.float32) + b_qkv_ref[l]
        qkv = qkv.reshape(B, S, 3 * E)

        heads = []
        for h in range(H):
            q = qkv[:, :, h * dh:(h + 1) * dh] * scale           # (B, S, dh)
            k = qkv[:, :, E + h * dh:E + (h + 1) * dh]
            v = qkv[:, :, 2 * E + h * dh:2 * E + (h + 1) * dh]
            sc = jnp.einsum('bqd,bkd->bqk', q, k,
                            preferred_element_type=jnp.float32)  # (B, S, S)
            sc = sc + key_bias[:, None, :]                       # mask keys
            sc = sc - jnp.max(sc, axis=-1, keepdims=True)
            ex = jnp.exp(sc)
            p = ex * pl.reciprocal(jnp.sum(ex, axis=-1, keepdims=True),
                                   approx=True)
            heads.append(jnp.einsum('bqk,bkd->bqd', p, v,
                                    preferred_element_type=jnp.float32))
        ctx = jnp.concatenate(heads, axis=-1).reshape(B * S, E)
        attn = jnp.dot(ctx, w_ao_ref[l],
                       preferred_element_type=jnp.float32) + b_ao_ref[l]

        src = src + attn                                   # residual (dropout1 = id)
        src = src * bn1_s_ref[l] + bn1_b_ref[l]            # BatchNorm1d (eval, folded)

        # ---- feed-forward: linear2(gelu(linear1(src))) ----
        h1 = jnp.dot(src, w_ff1_ref[l],
                     preferred_element_type=jnp.float32) + b_ff1_ref[l]
        h1 = _gelu(h1)
        h2 = jnp.dot(h1, w_ff2_ref[l],
                     preferred_element_type=jnp.float32) + b_ff2_ref[l]

        src = src + h2                                     # residual (dropout2 = id)
        src = src * bn2_s_ref[l] + bn2_b_ref[l]            # BatchNorm1d (eval, folded)

    # ---- output head: gelu -> zero padded positions -> flatten -> linear ----
    out = _gelu(src) * keep_col_ref[...]                   # (B*S, E)
    out = out.reshape(B, S, E)
    acc = jnp.zeros((B, C_PAD), jnp.float32)
    for s_idx in range(S):                                 # flatten via per-pos GEMMs
        acc = acc + jnp.dot(out[:, s_idx, :], out_w_ref[s_idx],
                            preferred_element_type=jnp.float32)
    o_ref[...] = acc + out_b_ref[...]                      # lane-dense (B, 128)


# ----------------------------- parameters / glue ---------------------------
def fixed_pos_encoding(max_len, d_model):
    position = jnp.arange(max_len, dtype=jnp.float32)[:, None]
    div_term = jnp.exp(jnp.arange(0, d_model, 2, dtype=jnp.float32)
                       * (-math.log(10000.0) / d_model))
    pe = jnp.zeros((max_len, d_model), jnp.float32)
    pe = pe.at[:, 0::2].set(jnp.sin(position * div_term))
    pe = pe.at[:, 1::2].set(jnp.cos(position * div_term))
    return pe


def init_params(key):
    def normal(k, shape, scale=0.02):
        return scale * jax.random.normal(k, shape, jnp.float32)

    keys = iter(jax.random.split(key, 64))
    params = {
        "proj_w": normal(next(keys), (FEAT_DIM, D_MODEL)),
        "proj_b": normal(next(keys), (D_MODEL,)),
        "out_w": normal(next(keys), (D_MODEL * MAX_LEN, NUM_CLASSES)),
        "out_b": normal(next(keys), (NUM_CLASSES,)),
        "layers": [],
    }
    for _ in range(NUM_LAYERS):
        params["layers"].append({
            "in_proj_w": normal(next(keys), (D_MODEL, 3 * D_MODEL)),
            "in_proj_b": normal(next(keys), (3 * D_MODEL,)),
            "attn_out_w": normal(next(keys), (D_MODEL, D_MODEL)),
            "attn_out_b": normal(next(keys), (D_MODEL,)),
            "bn1_w": 1.0 + normal(next(keys), (D_MODEL,), 0.1),
            "bn1_b": normal(next(keys), (D_MODEL,), 0.1),
            "bn1_rm": normal(next(keys), (D_MODEL,), 0.1),
            "bn1_rv": 1.0 + jnp.abs(normal(next(keys), (D_MODEL,), 0.1)),
            "lin1_w": normal(next(keys), (D_MODEL, DIM_FF)),
            "lin1_b": normal(next(keys), (DIM_FF,)),
            "lin2_w": normal(next(keys), (DIM_FF, D_MODEL)),
            "lin2_b": normal(next(keys), (D_MODEL,)),
            "bn2_w": 1.0 + normal(next(keys), (D_MODEL,), 0.1),
            "bn2_b": normal(next(keys), (D_MODEL,), 0.1),
            "bn2_rm": normal(next(keys), (D_MODEL,), 0.1),
            "bn2_rv": 1.0 + jnp.abs(normal(next(keys), (D_MODEL,), 0.1)),
        })
    return params


def prepare_inference_params(params, pe, batch):
    """Stack per-layer weights, fold BN eval stats, pad classifier to 128 lanes,
    tile positional encoding over the batch (all done once, outside the kernel)."""
    layers = params["layers"]

    def stack_mat(name):
        return jnp.stack([lp[name] for lp in layers])

    def stack_row(name):
        return jnp.stack([lp[name].reshape(1, -1) for lp in layers])

    bn1_scale = [lp["bn1_w"] / jnp.sqrt(lp["bn1_rv"] + BN_EPS) for lp in layers]
    bn2_scale = [lp["bn2_w"] / jnp.sqrt(lp["bn2_rv"] + BN_EPS) for lp in layers]
    bn1_s = jnp.stack([s.reshape(1, -1) for s in bn1_scale])
    bn1_b = jnp.stack([(lp["bn1_b"] - lp["bn1_rm"] * s).reshape(1, -1)
                       for lp, s in zip(layers, bn1_scale)])
    bn2_s = jnp.stack([s.reshape(1, -1) for s in bn2_scale])
    bn2_b = jnp.stack([(lp["bn2_b"] - lp["bn2_rm"] * s).reshape(1, -1)
                       for lp, s in zip(layers, bn2_scale)])

    # classifier: rows of out_w are indexed s*E + e  ->  reshape to (S, E, C), pad lanes
    out_w = params["out_w"].reshape(MAX_LEN, D_MODEL, NUM_CLASSES)
    out_w = jnp.pad(out_w, ((0, 0), (0, 0), (0, C_PAD - NUM_CLASSES)))
    out_b = jnp.pad(params["out_b"], (0, C_PAD - NUM_CLASSES)).reshape(1, C_PAD)

    return {
        "proj_w": params["proj_w"],
        "proj_b": params["proj_b"].reshape(1, D_MODEL),
        "pe": jnp.tile(pe[:MAX_LEN], (batch, 1)),            # (B*S, E)
        "w_qkv": stack_mat("in_proj_w"), "b_qkv": stack_row("in_proj_b"),
        "w_ao": stack_mat("attn_out_w"), "b_ao": stack_row("attn_out_b"),
        "bn1_s": bn1_s, "bn1_b": bn1_b,
        "w_ff1": stack_mat("lin1_w"), "b_ff1": stack_row("lin1_b"),
        "w_ff2": stack_mat("lin2_w"), "b_ff2": stack_row("lin2_b"),
        "bn2_s": bn2_s, "bn2_b": bn2_b,
        "out_w": out_w, "out_b": out_b,
    }


def forward(X, padding_masks, prep):
    """X: (B, S, feat_dim) f32, padding_masks: (B, S) bool -> (B, num_classes)."""
    B, S, _ = X.shape
    keep = padding_masks.astype(jnp.float32)                  # (B, S)
    keep_col = keep.reshape(B * S, 1)                         # per-token column mask

    logits_pad = pl.pallas_call(
        _fused_forward_kernel,
        out_shape=jax.ShapeDtypeStruct((B, C_PAD), jnp.float32),
        # no grid: single invocation, every operand is a full-array VMEM block
        # (total weights + activations ~200 KB << VMEM).
    )(X, keep, keep_col,
      prep["proj_w"], prep["proj_b"], prep["pe"],
      prep["w_qkv"], prep["b_qkv"], prep["w_ao"], prep["b_ao"],
      prep["bn1_s"], prep["bn1_b"],
      prep["w_ff1"], prep["b_ff1"], prep["w_ff2"], prep["b_ff2"],
      prep["bn2_s"], prep["bn2_b"],
      prep["out_w"], prep["out_b"])

    return logits_pad[:, :NUM_CLASSES]


if __name__ == "__main__":
    key = jax.random.PRNGKey(0)
    k_x, k_p = jax.random.split(key)
    X = jax.random.normal(k_x, (BATCH, MAX_LEN, FEAT_DIM), jnp.float32)
    padding_masks = jnp.array([[1, 1, 1, 1, 1, 1, 1, 1],
                               [1, 1, 1, 1, 1, 0, 0, 0]], dtype=bool)

    params = init_params(k_p)
    pe = fixed_pos_encoding(MAX_LEN, D_MODEL)
    prep = prepare_inference_params(params, pe, BATCH)

    fwd = jax.jit(lambda x, m: forward(x, m, prep))
    out = fwd(X, padding_masks)
    jax.block_until_ready(out)

    assert out.shape == (BATCH, NUM_CLASSES)
    assert bool(jnp.all(jnp.isfinite(out)))
    print("KERNEL_OK")
</pallas_src>

<mosaic_0001>
module attributes {stable_mosaic.version = 11 : i64} {
  func.func @_fused_forward_kernel(%arg0: memref<2x8x4xf32, #tpu.memory_space<vmem>>, %arg1: memref<2x8xf32, #tpu.memory_space<vmem>>, %arg2: memref<16x1xf32, #tpu.memory_space<vmem>>, %arg3: memref<4x32xf32, #tpu.memory_space<vmem>>, %arg4: memref<1x32xf32, #tpu.memory_space<vmem>>, %arg5: memref<16x32xf32, #tpu.memory_space<vmem>>, %arg6: memref<2x32x96xf32, #tpu.memory_space<vmem>>, %arg7: memref<2x1x96xf32, #tpu.memory_space<vmem>>, %arg8: memref<2x32x32xf32, #tpu.memory_space<vmem>>, %arg9: memref<2x1x32xf32, #tpu.memory_space<vmem>>, %arg10: memref<2x1x32xf32, #tpu.memory_space<vmem>>, %arg11: memref<2x1x32xf32, #tpu.memory_space<vmem>>, %arg12: memref<2x32x64xf32, #tpu.memory_space<vmem>>, %arg13: memref<2x1x64xf32, #tpu.memory_space<vmem>>, %arg14: memref<2x64x32xf32, #tpu.memory_space<vmem>>, %arg15: memref<2x1x32xf32, #tpu.memory_space<vmem>>, %arg16: memref<2x1x32xf32, #tpu.memory_space<vmem>>, %arg17: memref<2x1x32xf32, #tpu.memory_space<vmem>>, %arg18: memref<8x32x128xf32, #tpu.memory_space<vmem>>, %arg19: memref<1x128xf32, #tpu.memory_space<vmem>>, %arg20: memref<2x128xf32, #tpu.memory_space<vmem>>) attributes {dimension_semantics = [], scalar_prefetch = 0 : i64, scratch_operands = 0 : i64, tpu.core_type = #tpu.core_type<tc>} {
    %c0 = arith.constant 0 : index
    %c0_0 = arith.constant 0 : index
    %0 = vector.load %arg1[%c0, %c0_0] : memref<2x8xf32, #tpu.memory_space<vmem>>, vector<2x8xf32>
    %cst = arith.constant 1.000000e+00 : f32
    %1 = vector.broadcast %cst : f32 to vector<2x8xf32>
    %2 = arith.subf %0, %1 : vector<2x8xf32>
    %cst_1 = arith.constant 1.000000e+30 : f32
    %3 = vector.broadcast %cst_1 : f32 to vector<2x8xf32>
    %4 = arith.mulf %2, %3 : vector<2x8xf32>
    %c0_2 = arith.constant 0 : index
    %c0_3 = arith.constant 0 : index
    %c0_4 = arith.constant 0 : index
    %5 = vector.load %arg0[%c0_2, %c0_3, %c0_4] : memref<2x8x4xf32, #tpu.memory_space<vmem>>, vector<2x8x4xf32>
    %6 = vector.shape_cast %5 : vector<2x8x4xf32> to vector<16x4xf32>
    %c0_5 = arith.constant 0 : index
    %c0_6 = arith.constant 0 : index
    %7 = vector.load %arg3[%c0_5, %c0_6] : memref<4x32xf32, #tpu.memory_space<vmem>>, vector<4x32xf32>
    %cst_7 = arith.constant dense<0.000000e+00> : vector<16x32xf32>
    %8 = tpu.matmul %6, %7, %cst_7 {dimension_numbers = #tpu.dot_dimension_numbers<[1], [0], [0], [1], [0, 0, 1, 1], [], []>} : vector<16x4xf32>, vector<4x32xf32>, vector<16x32xf32> -> vector<16x32xf32>
    %c0_8 = arith.constant 0 : index
    %c0_9 = arith.constant 0 : index
    %9 = vector.load %arg4[%c0_8, %c0_9] : memref<1x32xf32, #tpu.memory_space<vmem>>, vector<1x32xf32>
    %10 = vector.broadcast %9 : vector<1x32xf32> to vector<16x32xf32>
    %11 = arith.addf %8, %10 : vector<16x32xf32>
    %cst_10 = arith.constant 5.65685415 : f32
    %12 = vector.broadcast %cst_10 : f32 to vector<16x32xf32>
    %13 = arith.mulf %11, %12 : vector<16x32xf32>
    %c0_11 = arith.constant 0 : index
    %c0_12 = arith.constant 0 : index
    %14 = vector.load %arg5[%c0_11, %c0_12] : memref<16x32xf32, #tpu.memory_space<vmem>>, vector<16x32xf32>
    %15 = arith.addf %13, %14 : vector<16x32xf32>
    %c0_13 = arith.constant 0 : index
    %c0_14 = arith.constant 0 : index
    %c0_15 = arith.constant 0 : index
    %16 = vector.load %arg6[%c0_13, %c0_14, %c0_15] : memref<2x32x96xf32, #tpu.memory_space<vmem>>, vector<1x32x96xf32>
    %17 = vector.shape_cast %16 : vector<1x32x96xf32> to vector<32x96xf32>
    %cst_16 = arith.constant dense<0.000000e+00> : vector<16x96xf32>
    %18 = tpu.matmul %15, %17, %cst_16 {dimension_numbers = #tpu.dot_dimension_numbers<[1], [0], [0], [1], [0, 0, 1, 1], [], []>} : vector<16x32xf32>, vector<32x96xf32>, vector<16x96xf32> -> vector<16x96xf32>
    %c0_17 = arith.constant 0 : index
    %c0_18 = arith.constant 0 : index
    %c0_19 = arith.constant 0 : index
    %19 = vector.load %arg7[%c0_17, %c0_18, %c0_19] : memref<2x1x96xf32, #tpu.memory_space<vmem>>, vector<1x1x96xf32>
    %20 = vector.shape_cast %19 : vector<1x1x96xf32> to vector<1x96xf32>
    %21 = vector.broadcast %20 : vector<1x96xf32> to vector<16x96xf32>
    %22 = arith.addf %18, %21 : vector<16x96xf32>
    %23 = vector.shape_cast %22 : vector<16x96xf32> to vector<2x8x96xf32>
    %24 = vector.extract_strided_slice %23 {offsets = [0, 0, 0], sizes = [2, 8, 8], strides = [1, 1, 1]} : vector<2x8x96xf32> to vector<2x8x8xf32>
    %cst_20 = arith.constant 0.353553385 : f32
    %25 = vector.broadcast %cst_20 : f32 to vector<2x8x8xf32>
    %26 = arith.mulf %24, %25 : vector<2x8x8xf32>
    %27 = vector.extract_strided_slice %23 {offsets = [0, 0, 32], sizes = [2, 8, 8], strides = [1, 1, 1]} : vector<2x8x96xf32> to vector<2x8x8xf32>
    %28 = vector.extract_strided_slice %23 {offsets = [0, 0, 64], sizes = [2, 8, 8], strides = [1, 1, 1]} : vector<2x8x96xf32> to vector<2x8x8xf32>
    "tpu.trace_start"() <{level = 10 : i32, message = "bqd,bkd->bqk"}> : () -> ()
    %cst_21 = arith.constant dense<0.000000e+00> : vector<2x8x8xf32>
    %29 = tpu.matmul %26, %27, %cst_21 {dimension_numbers = #tpu.dot_dimension_numbers<[2], [2], [1], [1], [0, 0, 0, 1, 1, 1], [0], [0]>} : vector<2x8x8xf32>, vector<2x8x8xf32>, vector<2x8x8xf32> -> vector<2x8x8xf32>
    "tpu.trace_stop"() : () -> ()
    %30 = vector.shape_cast %4 : vector<2x8xf32> to vector<2x1x8xf32>
    %31 = vector.broadcast %30 : vector<2x1x8xf32> to vector<2x8x8xf32>
    %32 = arith.addf %29, %31 : vector<2x8x8xf32>
    %cst_22 = arith.constant dense<0xFF800000> : vector<2x8xf32>
    %33 = vector.multi_reduction <maximumf>, %32, %cst_22 [2] : vector<2x8x8xf32> to vector<2x8xf32>
    %34 = vector.shape_cast %33 : vector<2x8xf32> to vector<2x8x1xf32>
    %35 = vector.broadcast %34 : vector<2x8x1xf32> to vector<2x8x8xf32>
    %36 = arith.subf %32, %35 : vector<2x8x8xf32>
    %37 = math.exp %36 : vector<2x8x8xf32>
    %cst_23 = arith.constant dense<0.000000e+00> : vector<2x8xf32>
    %38 = vector.multi_reduction <add>, %37, %cst_23 [2] : vector<2x8x8xf32> to vector<2x8xf32>
    %39 = vector.shape_cast %38 : vector<2x8xf32> to vector<2x8x1xf32>
    %40 = tpu.reciprocal %39 {approx = true} : vector<2x8x1xf32> -> vector<2x8x1xf32>
    %41 = vector.broadcast %40 : vector<2x8x1xf32> to vector<2x8x8xf32>
    %42 = arith.mulf %37, %41 : vector<2x8x8xf32>
    "tpu.trace_start"() <{level = 10 : i32, message = "bqk,bkd->bqd"}> : () -> ()
    %cst_24 = arith.constant dense<0.000000e+00> : vector<2x8x8xf32>
    %43 = tpu.matmul %42, %28, %cst_24 {dimension_numbers = #tpu.dot_dimension_numbers<[2], [1], [1], [2], [0, 0, 0, 1, 1, 2], [0], [0]>} : vector<2x8x8xf32>, vector<2x8x8xf32>, vector<2x8x8xf32> -> vector<2x8x8xf32>
    "tpu.trace_stop"() : () -> ()
    %44 = vector.extract_strided_slice %23 {offsets = [0, 0, 8], sizes = [2, 8, 8], strides = [1, 1, 1]} : vector<2x8x96xf32> to vector<2x8x8xf32>
    %cst_25 = arith.constant 0.353553385 : f32
    %45 = vector.broadcast %cst_25 : f32 to vector<2x8x8xf32>
    %46 = arith.mulf %44, %45 : vector<2x8x8xf32>
    %47 = vector.extract_strided_slice %23 {offsets = [0, 0, 40], sizes = [2, 8, 8], strides = [1, 1, 1]} : vector<2x8x96xf32> to vector<2x8x8xf32>
    %48 = vector.extract_strided_slice %23 {offsets = [0, 0, 72], sizes = [2, 8, 8], strides = [1, 1, 1]} : vector<2x8x96xf32> to vector<2x8x8xf32>
    "tpu.trace_start"() <{level = 10 : i32, message = "bqd,bkd->bqk"}> : () -> ()
    %cst_26 = arith.constant dense<0.000000e+00> : vector<2x8x8xf32>
    %49 = tpu.matmul %46, %47, %cst_26 {dimension_numbers = #tpu.dot_dimension_numbers<[2], [2], [1], [1], [0, 0, 0, 1, 1, 1], [0], [0]>} : vector<2x8x8xf32>, vector<2x8x8xf32>, vector<2x8x8xf32> -> vector<2x8x8xf32>
    "tpu.trace_stop"() : () -> ()
    %50 = vector.shape_cast %4 : vector<2x8xf32> to vector<2x1x8xf32>
    %51 = vector.broadcast %50 : vector<2x1x8xf32> to vector<2x8x8xf32>
    %52 = arith.addf %49, %51 : vector<2x8x8xf32>
    %cst_27 = arith.constant dense<0xFF800000> : vector<2x8xf32>
    %53 = vector.multi_reduction <maximumf>, %52, %cst_27 [2] : vector<2x8x8xf32> to vector<2x8xf32>
    %54 = vector.shape_cast %53 : vector<2x8xf32> to vector<2x8x1xf32>
    %55 = vector.broadcast %54 : vector<2x8x1xf32> to vector<2x8x8xf32>
    %56 = arith.subf %52, %55 : vector<2x8x8xf32>
    %57 = math.exp %56 : vector<2x8x8xf32>
    %cst_28 = arith.constant dense<0.000000e+00> : vector<2x8xf32>
    %58 = vector.multi_reduction <add>, %57, %cst_28 [2] : vector<2x8x8xf32> to vector<2x8xf32>
    %59 = vector.shape_cast %58 : vector<2x8xf32> to vector<2x8x1xf32>
    %60 = tpu.reciprocal %59 {approx = true} : vector<2x8x1xf32> -> vector<2x8x1xf32>
    %61 = vector.broadcast %60 : vector<2x8x1xf32> to vector<2x8x8xf32>
    %62 = arith.mulf %57, %61 : vector<2x8x8xf32>
    "tpu.trace_start"() <{level = 10 : i32, message = "bqk,bkd->bqd"}> : () -> ()
    %cst_29 = arith.constant dense<0.000000e+00> : vector<2x8x8xf32>
    %63 = tpu.matmul %62, %48, %cst_29 {dimension_numbers = #tpu.dot_dimension_numbers<[2], [1], [1], [2], [0, 0, 0, 1, 1, 2], [0], [0]>} : vector<2x8x8xf32>, vector<2x8x8xf32>, vector<2x8x8xf32> -> vector<2x8x8xf32>
    "tpu.trace_stop"() : () -> ()
    %64 = vector.extract_strided_slice %23 {offsets = [0, 0, 16], sizes = [2, 8, 8], strides = [1, 1, 1]} : vector<2x8x96xf32> to vector<2x8x8xf32>
    %cst_30 = arith.constant 0.353553385 : f32
    %65 = vector.broadcast %cst_30 : f32 to vector<2x8x8xf32>
    %66 = arith.mulf %64, %65 : vector<2x8x8xf32>
    %67 = vector.extract_strided_slice %23 {offsets = [0, 0, 48], sizes = [2, 8, 8], strides = [1, 1, 1]} : vector<2x8x96xf32> to vector<2x8x8xf32>
    %68 = vector.extract_strided_slice %23 {offsets = [0, 0, 80], sizes = [2, 8, 8], strides = [1, 1, 1]} : vector<2x8x96xf32> to vector<2x8x8xf32>
    "tpu.trace_start"() <{level = 10 : i32, message = "bqd,bkd->bqk"}> : () -> ()
    %cst_31 = arith.constant dense<0.000000e+00> : vector<2x8x8xf32>
    %69 = tpu.matmul %66, %67, %cst_31 {dimension_numbers = #tpu.dot_dimension_numbers<[2], [2], [1], [1], [0, 0, 0, 1, 1, 1], [0], [0]>} : vector<2x8x8xf32>, vector<2x8x8xf32>, vector<2x8x8xf32> -> vector<2x8x8xf32>
    "tpu.trace_stop"() : () -> ()
    %70 = vector.shape_cast %4 : vector<2x8xf32> to vector<2x1x8xf32>
    %71 = vector.broadcast %70 : vector<2x1x8xf32> to vector<2x8x8xf32>
    %72 = arith.addf %69, %71 : vector<2x8x8xf32>
    %cst_32 = arith.constant dense<0xFF800000> : vector<2x8xf32>
    %73 = vector.multi_reduction <maximumf>, %72, %cst_32 [2] : vector<2x8x8xf32> to vector<2x8xf32>
    %74 = vector.shape_cast %73 : vector<2x8xf32> to vector<2x8x1xf32>
    %75 = vector.broadcast %74 : vector<2x8x1xf32> to vector<2x8x8xf32>
    %76 = arith.subf %72, %75 : vector<2x8x8xf32>
    %77 = math.exp %76 : vector<2x8x8xf32>
    %cst_33 = arith.constant dense<0.000000e+00> : vector<2x8xf32>
    %78 = vector.multi_reduction <add>, %77, %cst_33 [2] : vector<2x8x8xf32> to vector<2x8xf32>
    %79 = vector.shape_cast %78 : vector<2x8xf32> to vector<2x8x1xf32>
    %80 = tpu.reciprocal %79 {approx = true} : vector<2x8x1xf32> -> vector<2x8x1xf32>
    %81 = vector.broadcast %80 : vector<2x8x1xf32> to vector<2x8x8xf32>
    %82 = arith.mulf %77, %81 : vector<2x8x8xf32>
    "tpu.trace_start"() <{level = 10 : i32, message = "bqk,bkd->bqd"}> : () -> ()
    %cst_34 = arith.constant dense<0.000000e+00> : vector<2x8x8xf32>
    %83 = tpu.matmul %82, %68, %cst_34 {dimension_numbers = #tpu.dot_dimension_numbers<[2], [1], [1], [2], [0, 0, 0, 1, 1, 2], [0], [0]>} : vector<2x8x8xf32>, vector<2x8x8xf32>, vector<2x8x8xf32> -> vector<2x8x8xf32>
    "tpu.trace_stop"() : () -> ()
    %84 = vector.extract_strided_slice %23 {offsets = [0, 0, 24], sizes = [2, 8, 8], strides = [1, 1, 1]} : vector<2x8x96xf32> to vector<2x8x8xf32>
    %cst_35 = arith.constant 0.353553385 : f32
    %85 = vector.broadcast %cst_35 : f32 to vector<2x8x8xf32>
    %86 = arith.mulf %84, %85 : vector<2x8x8xf32>
    %87 = vector.extract_strided_slice %23 {offsets = [0, 0, 56], sizes = [2, 8, 8], strides = [1, 1, 1]} : vector<2x8x96xf32> to vector<2x8x8xf32>
    %88 = vector.extract_strided_slice %23 {offsets = [0, 0, 88], sizes = [2, 8, 8], strides = [1, 1, 1]} : vector<2x8x96xf32> to vector<2x8x8xf32>
    "tpu.trace_start"() <{level = 10 : i32, message = "bqd,bkd->bqk"}> : () -> ()
    %cst_36 = arith.constant dense<0.000000e+00> : vector<2x8x8xf32>
    %89 = tpu.matmul %86, %87, %cst_36 {dimension_numbers = #tpu.dot_dimension_numbers<[2], [2], [1], [1], [0, 0, 0, 1, 1, 1], [0], [0]>} : vector<2x8x8xf32>, vector<2x8x8xf32>, vector<2x8x8xf32> -> vector<2x8x8xf32>
    "tpu.trace_stop"() : () -> ()
    %90 = vector.shape_cast %4 : vector<2x8xf32> to vector<2x1x8xf32>
    %91 = vector.broadcast %90 : vector<2x1x8xf32> to vector<2x8x8xf32>
    %92 = arith.addf %89, %91 : vector<2x8x8xf32>
    %cst_37 = arith.constant dense<0xFF800000> : vector<2x8xf32>
    %93 = vector.multi_reduction <maximumf>, %92, %cst_37 [2] : vector<2x8x8xf32> to vector<2x8xf32>
    %94 = vector.shape_cast %93 : vector<2x8xf32> to vector<2x8x1xf32>
    %95 = vector.broadcast %94 : vector<2x8x1xf32> to vector<2x8x8xf32>
    %96 = arith.subf %92, %95 : vector<2x8x8xf32>
    %97 = math.exp %96 : vector<2x8x8xf32>
    %cst_38 = arith.constant dense<0.000000e+00> : vector<2x8xf32>
    %98 = vector.multi_reduction <add>, %97, %cst_38 [2] : vector<2x8x8xf32> to vector<2x8xf32>
    %99 = vector.shape_cast %98 : vector<2x8xf32> to vector<2x8x1xf32>
    %100 = tpu.reciprocal %99 {approx = true} : vector<2x8x1xf32> -> vector<2x8x1xf32>
    %101 = vector.broadcast %100 : vector<2x8x1xf32> to vector<2x8x8xf32>
    %102 = arith.mulf %97, %101 : vector<2x8x8xf32>
    "tpu.trace_start"() <{level = 10 : i32, message = "bqk,bkd->bqd"}> : () -> ()
    %cst_39 = arith.constant dense<0.000000e+00> : vector<2x8x8xf32>
    %103 = tpu.matmul %102, %88, %cst_39 {dimension_numbers = #tpu.dot_dimension_numbers<[2], [1], [1], [2], [0, 0, 0, 1, 1, 2], [0], [0]>} : vector<2x8x8xf32>, vector<2x8x8xf32>, vector<2x8x8xf32> -> vector<2x8x8xf32>
    "tpu.trace_stop"() : () -> ()
    %104 = tpu.concatenate %43, %63, %83, %103 in 2 : vector<2x8x8xf32>, vector<2x8x8xf32>, vector<2x8x8xf32>, vector<2x8x8xf32> -> vector<2x8x32xf32>
    %105 = vector.shape_cast %104 : vector<2x8x32xf32> to vector<16x32xf32>
    %c0_40 = arith.constant 0 : index
    %c0_41 = arith.constant 0 : index
    %c0_42 = arith.constant 0 : index
    %106 = vector.load %arg8[%c0_40, %c0_41, %c0_42] : memref<2x32x32xf32, #tpu.memory_space<vmem>>, vector<1x32x32xf32>
    %107 = vector.shape_cast %106 : vector<1x32x32xf32> to vector<32x32xf32>
    %cst_43 = arith.constant dense<0.000000e+00> : vector<16x32xf32>
    %108 = tpu.matmul %105, %107, %cst_43 {dimension_numbers = #tpu.dot_dimension_numbers<[1], [0], [0], [1], [0, 0, 1, 1], [], []>} : vector<16x32xf32>, vector<32x32xf32>, vector<16x32xf32> -> vector<16x32xf32>
    %c0_44 = arith.constant 0 : index
    %c0_45 = arith.constant 0 : index
    %c0_46 = arith.constant 0 : index
    %109 = vector.load %arg9[%c0_44, %c0_45, %c0_46] : memref<2x1x32xf32, #tpu.memory_space<vmem>>, vector<1x1x32xf32>
    %110 = vector.shape_cast %109 : vector<1x1x32xf32> to vector<1x32xf32>
    %111 = vector.broadcast %110 : vector<1x32xf32> to vector<16x32xf32>
    %112 = arith.addf %108, %111 : vector<16x32xf32>
    %113 = arith.addf %15, %112 : vector<16x32xf32>
    %c0_47 = arith.constant 0 : index
    %c0_48 = arith.constant 0 : index
    %c0_49 = arith.constant 0 : index
    %114 = vector.load %arg10[%c0_47, %c0_48, %c0_49] : memref<2x1x32xf32, #tpu.memory_space<vmem>>, vector<1x1x32xf32>
    %115 = vector.shape_cast %114 : vector<1x1x32xf32> to vector<1x32xf32>
    %116 = vector.broadcast %115 : vector<1x32xf32> to vector<16x32xf32>
    %117 = arith.mulf %113, %116 : vector<16x32xf32>
    %c0_50 = arith.constant 0 : index
    %c0_51 = arith.constant 0 : index
    %c0_52 = arith.constant 0 : index
    %118 = vector.load %arg11[%c0_50, %c0_51, %c0_52] : memref<2x1x32xf32, #tpu.memory_space<vmem>>, vector<1x1x32xf32>
    %119 = vector.shape_cast %118 : vector<1x1x32xf32> to vector<1x32xf32>
    %120 = vector.broadcast %119 : vector<1x32xf32> to vector<16x32xf32>
    %121 = arith.addf %117, %120 : vector<16x32xf32>
    %c0_53 = arith.constant 0 : index
    %c0_54 = arith.constant 0 : index
    %c0_55 = arith.constant 0 : index
    %122 = vector.load %arg12[%c0_53, %c0_54, %c0_55] : memref<2x32x64xf32, #tpu.memory_space<vmem>>, vector<1x32x64xf32>
    %123 = vector.shape_cast %122 : vector<1x32x64xf32> to vector<32x64xf32>
    %cst_56 = arith.constant dense<0.000000e+00> : vector<16x64xf32>
    %124 = tpu.matmul %121, %123, %cst_56 {dimension_numbers = #tpu.dot_dimension_numbers<[1], [0], [0], [1], [0, 0, 1, 1], [], []>} : vector<16x32xf32>, vector<32x64xf32>, vector<16x64xf32> -> vector<16x64xf32>
    %c0_57 = arith.constant 0 : index
    %c0_58 = arith.constant 0 : index
    %c0_59 = arith.constant 0 : index
    %125 = vector.load %arg13[%c0_57, %c0_58, %c0_59] : memref<2x1x64xf32, #tpu.memory_space<vmem>>, vector<1x1x64xf32>
    %126 = vector.shape_cast %125 : vector<1x1x64xf32> to vector<1x64xf32>
    %127 = vector.broadcast %126 : vector<1x64xf32> to vector<16x64xf32>
    %128 = arith.addf %124, %127 : vector<16x64xf32>
    %cst_60 = arith.constant 5.000000e-01 : f32
    %129 = vector.broadcast %cst_60 : f32 to vector<16x64xf32>
    %130 = arith.mulf %129, %128 : vector<16x64xf32>
    %cst_61 = arith.constant 0.707106769 : f32
    %131 = vector.broadcast %cst_61 : f32 to vector<16x64xf32>
    %132 = arith.mulf %128, %131 : vector<16x64xf32>
    %133 = math.erf %132 : vector<16x64xf32>
    %cst_62 = arith.constant 1.000000e+00 : f32
    %134 = vector.broadcast %cst_62 : f32 to vector<16x64xf32>
    %135 = arith.addf %134, %133 : vector<16x64xf32>
    %136 = arith.mulf %130, %135 : vector<16x64xf32>
    %c0_63 = arith.constant 0 : index
    %c0_64 = arith.constant 0 : index
    %c0_65 = arith.constant 0 : index
    %137 = vector.load %arg14[%c0_63, %c0_64, %c0_65] : memref<2x64x32xf32, #tpu.memory_space<vmem>>, vector<1x64x32xf32>
    %138 = vector.shape_cast %137 : vector<1x64x32xf32> to vector<64x32xf32>
    %cst_66 = arith.constant dense<0.000000e+00> : vector<16x32xf32>
    %139 = tpu.matmul %136, %138, %cst_66 {dimension_numbers = #tpu.dot_dimension_numbers<[1], [0], [0], [1], [0, 0, 1, 1], [], []>} : vector<16x64xf32>, vector<64x32xf32>, vector<16x32xf32> -> vector<16x32xf32>
    %c0_67 = arith.constant 0 : index
    %c0_68 = arith.constant 0 : index
    %c0_69 = arith.constant 0 : index
    %140 = vector.load %arg15[%c0_67, %c0_68, %c0_69] : memref<2x1x32xf32, #tpu.memory_space<vmem>>, vector<1x1x32xf32>
    %141 = vector.shape_cast %140 : vector<1x1x32xf32> to vector<1x32xf32>
    %142 = vector.broadcast %141 : vector<1x32xf32> to vector<16x32xf32>
    %143 = arith.addf %139, %142 : vector<16x32xf32>
    %144 = arith.addf %121, %143 : vector<16x32xf32>
    %c0_70 = arith.constant 0 : index
    %c0_71 = arith.constant 0 : index
    %c0_72 = arith.constant 0 : index
    %145 = vector.load %arg16[%c0_70, %c0_71, %c0_72] : memref<2x1x32xf32, #tpu.memory_space<vmem>>, vector<1x1x32xf32>
    %146 = vector.shape_cast %145 : vector<1x1x32xf32> to vector<1x32xf32>
    %147 = vector.broadcast %146 : vector<1x32xf32> to vector<16x32xf32>
    %148 = arith.mulf %144, %147 : vector<16x32xf32>
    %c0_73 = arith.constant 0 : index
    %c0_74 = arith.constant 0 : index
    %c0_75 = arith.constant 0 : index
    %149 = vector.load %arg17[%c0_73, %c0_74, %c0_75] : memref<2x1x32xf32, #tpu.memory_space<vmem>>, vector<1x1x32xf32>
    %150 = vector.shape_cast %149 : vector<1x1x32xf32> to vector<1x32xf32>
    %151 = vector.broadcast %150 : vector<1x32xf32> to vector<16x32xf32>
    %152 = arith.addf %148, %151 : vector<16x32xf32>
    %c1 = arith.constant 1 : index
    %c0_76 = arith.constant 0 : index
    %c0_77 = arith.constant 0 : index
    %153 = vector.load %arg6[%c1, %c0_76, %c0_77] : memref<2x32x96xf32, #tpu.memory_space<vmem>>, vector<1x32x96xf32>
    %154 = vector.shape_cast %153 : vector<1x32x96xf32> to vector<32x96xf32>
    %cst_78 = arith.constant dense<0.000000e+00> : vector<16x96xf32>
    %155 = tpu.matmul %152, %154, %cst_78 {dimension_numbers = #tpu.dot_dimension_numbers<[1], [0], [0], [1], [0, 0, 1, 1], [], []>} : vector<16x32xf32>, vector<32x96xf32>, vector<16x96xf32> -> vector<16x96xf32>
    %c1_79 = arith.constant 1 : index
    %c0_80 = arith.constant 0 : index
    %c0_81 = arith.constant 0 : index
    %156 = vector.load %arg7[%c1_79, %c0_80, %c0_81] : memref<2x1x96xf32, #tpu.memory_space<vmem>>, vector<1x1x96xf32>
    %157 = vector.shape_cast %156 : vector<1x1x96xf32> to vector<1x96xf32>
    %158 = vector.broadcast %157 : vector<1x96xf32> to vector<16x96xf32>
    %159 = arith.addf %155, %158 : vector<16x96xf32>
    %160 = vector.shape_cast %159 : vector<16x96xf32> to vector<2x8x96xf32>
    %161 = vector.extract_strided_slice %160 {offsets = [0, 0, 0], sizes = [2, 8, 8], strides = [1, 1, 1]} : vector<2x8x96xf32> to vector<2x8x8xf32>
    %cst_82 = arith.constant 0.353553385 : f32
    %162 = vector.broadcast %cst_82 : f32 to vector<2x8x8xf32>
    %163 = arith.mulf %161, %162 : vector<2x8x8xf32>
    %164 = vector.extract_strided_slice %160 {offsets = [0, 0, 32], sizes = [2, 8, 8], strides = [1, 1, 1]} : vector<2x8x96xf32> to vector<2x8x8xf32>
    %165 = vector.extract_strided_slice %160 {offsets = [0, 0, 64], sizes = [2, 8, 8], strides = [1, 1, 1]} : vector<2x8x96xf32> to vector<2x8x8xf32>
    "tpu.trace_start"() <{level = 10 : i32, message = "bqd,bkd->bqk"}> : () -> ()
    %cst_83 = arith.constant dense<0.000000e+00> : vector<2x8x8xf32>
    %166 = tpu.matmul %163, %164, %cst_83 {dimension_numbers = #tpu.dot_dimension_numbers<[2], [2], [1], [1], [0, 0, 0, 1, 1, 1], [0], [0]>} : vector<2x8x8xf32>, vector<2x8x8xf32>, vector<2x8x8xf32> -> vector<2x8x8xf32>
    "tpu.trace_stop"() : () -> ()
    %167 = vector.shape_cast %4 : vector<2x8xf32> to vector<2x1x8xf32>
    %168 = vector.broadcast %167 : vector<2x1x8xf32> to vector<2x8x8xf32>
    %169 = arith.addf %166, %168 : vector<2x8x8xf32>
    %cst_84 = arith.constant dense<0xFF800000> : vector<2x8xf32>
    %170 = vector.multi_reduction <maximumf>, %169, %cst_84 [2] : vector<2x8x8xf32> to vector<2x8xf32>
    %171 = vector.shape_cast %170 : vector<2x8xf32> to vector<2x8x1xf32>
    %172 = vector.broadcast %171 : vector<2x8x1xf32> to vector<2x8x8xf32>
    %173 = arith.subf %169, %172 : vector<2x8x8xf32>
    %174 = math.exp %173 : vector<2x8x8xf32>
    %cst_85 = arith.constant dense<0.000000e+00> : vector<2x8xf32>
    %175 = vector.multi_reduction <add>, %174, %cst_85 [2] : vector<2x8x8xf32> to vector<2x8xf32>
    %176 = vector.shape_cast %175 : vector<2x8xf32> to vector<2x8x1xf32>
    %177 = tpu.reciprocal %176 {approx = true} : vector<2x8x1xf32> -> vector<2x8x1xf32>
    %178 = vector.broadcast %177 : vector<2x8x1xf32> to vector<2x8x8xf32>
    %179 = arith.mulf %174, %178 : vector<2x8x8xf32>
    "tpu.trace_start"() <{level = 10 : i32, message = "bqk,bkd->bqd"}> : () -> ()
    %cst_86 = arith.constant dense<0.000000e+00> : vector<2x8x8xf32>
    %180 = tpu.matmul %179, %165, %cst_86 {dimension_numbers = #tpu.dot_dimension_numbers<[2], [1], [1], [2], [0, 0, 0, 1, 1, 2], [0], [0]>} : vector<2x8x8xf32>, vector<2x8x8xf32>, vector<2x8x8xf32> -> vector<2x8x8xf32>
    "tpu.trace_stop"() : () -> ()
    %181 = vector.extract_strided_slice %160 {offsets = [0, 0, 8], sizes = [2, 8, 8], strides = [1, 1, 1]} : vector<2x8x96xf32> to vector<2x8x8xf32>
    %cst_87 = arith.constant 0.353553385 : f32
    %182 = vector.broadcast %cst_87 : f32 to vector<2x8x8xf32>
    %183 = arith.mulf %181, %182 : vector<2x8x8xf32>
    %184 = vector.extract_strided_slice %160 {offsets = [0, 0, 40], sizes = [2, 8, 8], strides = [1, 1, 1]} : vector<2x8x96xf32> to vector<2x8x8xf32>
    %185 = vector.extract_strided_slice %160 {offsets = [0, 0, 72], sizes = [2, 8, 8], strides = [1, 1, 1]} : vector<2x8x96xf32> to vector<2x8x8xf32>
    "tpu.trace_start"() <{level = 10 : i32, message = "bqd,bkd->bqk"}> : () -> ()
    %cst_88 = arith.constant dense<0.000000e+00> : vector<2x8x8xf32>
    %186 = tpu.matmul %183, %184, %cst_88 {dimension_numbers = #tpu.dot_dimension_numbers<[2], [2], [1], [1], [0, 0, 0, 1, 1, 1], [0], [0]>} : vector<2x8x8xf32>, vector<2x8x8xf32>, vector<2x8x8xf32> -> vector<2x8x8xf32>
    "tpu.trace_stop"() : () -> ()
    %187 = vector.shape_cast %4 : vector<2x8xf32> to vector<2x1x8xf32>
    %188 = vector.broadcast %187 : vector<2x1x8xf32> to vector<2x8x8xf32>
    %189 = arith.addf %186, %188 : vector<2x8x8xf32>
    %cst_89 = arith.constant dense<0xFF800000> : vector<2x8xf32>
    %190 = vector.multi_reduction <maximumf>, %189, %cst_89 [2] : vector<2x8x8xf32> to vector<2x8xf32>
    %191 = vector.shape_cast %190 : vector<2x8xf32> to vector<2x8x1xf32>
    %192 = vector.broadcast %191 : vector<2x8x1xf32> to vector<2x8x8xf32>
    %193 = arith.subf %189, %192 : vector<2x8x8xf32>
    %194 = math.exp %193 : vector<2x8x8xf32>
    %cst_90 = arith.constant dense<0.000000e+00> : vector<2x8xf32>
    %195 = vector.multi_reduction <add>, %194, %cst_90 [2] : vector<2x8x8xf32> to vector<2x8xf32>
    %196 = vector.shape_cast %195 : vector<2x8xf32> to vector<2x8x1xf32>
    %197 = tpu.reciprocal %196 {approx = true} : vector<2x8x1xf32> -> vector<2x8x1xf32>
    %198 = vector.broadcast %197 : vector<2x8x1xf32> to vector<2x8x8xf32>
    %199 = arith.mulf %194, %198 : vector<2x8x8xf32>
    "tpu.trace_start"() <{level = 10 : i32, message = "bqk,bkd->bqd"}> : () -> ()
    %cst_91 = arith.constant dense<0.000000e+00> : vector<2x8x8xf32>
    %200 = tpu.matmul %199, %185, %cst_91 {dimension_numbers = #tpu.dot_dimension_numbers<[2], [1], [1], [2], [0, 0, 0, 1, 1, 2], [0], [0]>} : vector<2x8x8xf32>, vector<2x8x8xf32>, vector<2x8x8xf32> -> vector<2x8x8xf32>
    "tpu.trace_stop"() : () -> ()
    %201 = vector.extract_strided_slice %160 {offsets = [0, 0, 16], sizes = [2, 8, 8], strides = [1, 1, 1]} : vector<2x8x96xf32> to vector<2x8x8xf32>
    %cst_92 = arith.constant 0.353553385 : f32
    %202 = vector.broadcast %cst_92 : f32 to vector<2x8x8xf32>
    %203 = arith.mulf %201, %202 : vector<2x8x8xf32>
    %204 = vector.extract_strided_slice %160 {offsets = [0, 0, 48], sizes = [2, 8, 8], strides = [1, 1, 1]} : vector<2x8x96xf32> to vector<2x8x8xf32>
    %205 = vector.extract_strided_slice %160 {offsets = [0, 0, 80], sizes = [2, 8, 8], strides = [1, 1, 1]} : vector<2x8x96xf32> to vector<2x8x8xf32>
    "tpu.trace_start"() <{level = 10 : i32, message = "bqd,bkd->bqk"}> : () -> ()
    %cst_93 = arith.constant dense<0.000000e+00> : vector<2x8x8xf32>
    %206 = tpu.matmul %203, %204, %cst_93 {dimension_numbers = #tpu.dot_dimension_numbers<[2], [2], [1], [1], [0, 0, 0, 1, 1, 1], [0], [0]>} : vector<2x8x8xf32>, vector<2x8x8xf32>, vector<2x8x8xf32> -> vector<2x8x8xf32>
    "tpu.trace_stop"() : () -> ()
    %207 = vector.shape_cast %4 : vector<2x8xf32> to vector<2x1x8xf32>
    %208 = vector.broadcast %207 : vector<2x1x8xf32> to vector<2x8x8xf32>
    %209 = arith.addf %206, %208 : vector<2x8x8xf32>
    %cst_94 = arith.constant dense<0xFF800000> : vector<2x8xf32>
    %210 = vector.multi_reduction <maximumf>, %209, %cst_94 [2] : vector<2x8x8xf32> to vector<2x8xf32>
    %211 = vector.shape_cast %210 : vector<2x8xf32> to vector<2x8x1xf32>
    %212 = vector.broadcast %211 : vector<2x8x1xf32> to vector<2x8x8xf32>
    %213 = arith.subf %209, %212 : vector<2x8x8xf32>
    %214 = math.exp %213 : vector<2x8x8xf32>
    %cst_95 = arith.constant dense<0.000000e+00> : vector<2x8xf32>
    %215 = vector.multi_reduction <add>, %214, %cst_95 [2] : vector<2x8x8xf32> to vector<2x8xf32>
    %216 = vector.shape_cast %215 : vector<2x8xf32> to vector<2x8x1xf32>
    %217 = tpu.reciprocal %216 {approx = true} : vector<2x8x1xf32> -> vector<2x8x1xf32>
    %218 = vector.broadcast %217 : vector<2x8x1xf32> to vector<2x8x8xf32>
    %219 = arith.mulf %214, %218 : vector<2x8x8xf32>
    "tpu.trace_start"() <{level = 10 : i32, message = "bqk,bkd->bqd"}> : () -> ()
    %cst_96 = arith.constant dense<0.000000e+00> : vector<2x8x8xf32>
    %220 = tpu.matmul %219, %205, %cst_96 {dimension_numbers = #tpu.dot_dimension_numbers<[2], [1], [1], [2], [0, 0, 0, 1, 1, 2], [0], [0]>} : vector<2x8x8xf32>, vector<2x8x8xf32>, vector<2x8x8xf32> -> vector<2x8x8xf32>
    "tpu.trace_stop"() : () -> ()
    %221 = vector.extract_strided_slice %160 {offsets = [0, 0, 24], sizes = [2, 8, 8], strides = [1, 1, 1]} : vector<2x8x96xf32> to vector<2x8x8xf32>
    %cst_97 = arith.constant 0.353553385 : f32
    %222 = vector.broadcast %cst_97 : f32 to vector<2x8x8xf32>
    %223 = arith.mulf %221, %222 : vector<2x8x8xf32>
    %224 = vector.extract_strided_slice %160 {offsets = [0, 0, 56], sizes = [2, 8, 8], strides = [1, 1, 1]} : vector<2x8x96xf32> to vector<2x8x8xf32>
    %225 = vector.extract_strided_slice %160 {offsets = [0, 0, 88], sizes = [2, 8, 8], strides = [1, 1, 1]} : vector<2x8x96xf32> to vector<2x8x8xf32>
    "tpu.trace_start"() <{level = 10 : i32, message = "bqd,bkd->bqk"}> : () -> ()
    %cst_98 = arith.constant dense<0.000000e+00> : vector<2x8x8xf32>
    %226 = tpu.matmul %223, %224, %cst_98 {dimension_numbers = #tpu.dot_dimension_numbers<[2], [2], [1], [1], [0, 0, 0, 1, 1, 1], [0], [0]>} : vector<2x8x8xf32>, vector<2x8x8xf32>, vector<2x8x8xf32> -> vector<2x8x8xf32>
    "tpu.trace_stop"() : () -> ()
    %227 = vector.shape_cast %4 : vector<2x8xf32> to vector<2x1x8xf32>
    %228 = vector.broadcast %227 : vector<2x1x8xf32> to vector<2x8x8xf32>
    %229 = arith.addf %226, %228 : vector<2x8x8xf32>
    %cst_99 = arith.constant dense<0xFF800000> : vector<2x8xf32>
    %230 = vector.multi_reduction <maximumf>, %229, %cst_99 [2] : vector<2x8x8xf32> to vector<2x8xf32>
    %231 = vector.shape_cast %230 : vector<2x8xf32> to vector<2x8x1xf32>
    %232 = vector.broadcast %231 : vector<2x8x1xf32> to vector<2x8x8xf32>
    %233 = arith.subf %229, %232 : vector<2x8x8xf32>
    %234 = math.exp %233 : vector<2x8x8xf32>
    %cst_100 = arith.constant dense<0.000000e+00> : vector<2x8xf32>
    %235 = vector.multi_reduction <add>, %234, %cst_100 [2] : vector<2x8x8xf32> to vector<2x8xf32>
    %236 = vector.shape_cast %235 : vector<2x8xf32> to vector<2x8x1xf32>
    %237 = tpu.reciprocal %236 {approx = true} : vector<2x8x1xf32> -> vector<2x8x1xf32>
    %238 = vector.broadcast %237 : vector<2x8x1xf32> to vector<2x8x8xf32>
    %239 = arith.mulf %234, %238 : vector<2x8x8xf32>
    "tpu.trace_start"() <{level = 10 : i32, message = "bqk,bkd->bqd"}> : () -> ()
    %cst_101 = arith.constant dense<0.000000e+00> : vector<2x8x8xf32>
    %240 = tpu.matmul %239, %225, %cst_101 {dimension_numbers = #tpu.dot_dimension_numbers<[2], [1], [1], [2], [0, 0, 0, 1, 1, 2], [0], [0]>} : vector<2x8x8xf32>, vector<2x8x8xf32>, vector<2x8x8xf32> -> vector<2x8x8xf32>
    "tpu.trace_stop"() : () -> ()
    %241 = tpu.concatenate %180, %200, %220, %240 in 2 : vector<2x8x8xf32>, vector<2x8x8xf32>, vector<2x8x8xf32>, vector<2x8x8xf32> -> vector<2x8x32xf32>
    %242 = vector.shape_cast %241 : vector<2x8x32xf32> to vector<16x32xf32>
    %c1_102 = arith.constant 1 : index
    %c0_103 = arith.constant 0 : index
    %c0_104 = arith.constant 0 : index
    %243 = vector.load %arg8[%c1_102, %c0_103, %c0_104] : memref<2x32x32xf32, #tpu.memory_space<vmem>>, vector<1x32x32xf32>
    %244 = vector.shape_cast %243 : vector<1x32x32xf32> to vector<32x32xf32>
    %cst_105 = arith.constant dense<0.000000e+00> : vector<16x32xf32>
    %245 = tpu.matmul %242, %244, %cst_105 {dimension_numbers = #tpu.dot_dimension_numbers<[1], [0], [0], [1], [0, 0, 1, 1], [], []>} : vector<16x32xf32>, vector<32x32xf32>, vector<16x32xf32> -> vector<16x32xf32>
    %c1_106 = arith.constant 1 : index
    %c0_107 = arith.constant 0 : index
    %c0_108 = arith.constant 0 : index
    %246 = vector.load %arg9[%c1_106, %c0_107, %c0_108] : memref<2x1x32xf32, #tpu.memory_space<vmem>>, vector<1x1x32xf32>
    %247 = vector.shape_cast %246 : vector<1x1x32xf32> to vector<1x32xf32>
    %248 = vector.broadcast %247 : vector<1x32xf32> to vector<16x32xf32>
    %249 = arith.addf %245, %248 : vector<16x32xf32>
    %250 = arith.addf %152, %249 : vector<16x32xf32>
    %c1_109 = arith.constant 1 : index
    %c0_110 = arith.constant 0 : index
    %c0_111 = arith.constant 0 : index
    %251 = vector.load %arg10[%c1_109, %c0_110, %c0_111] : memref<2x1x32xf32, #tpu.memory_space<vmem>>, vector<1x1x32xf32>
    %252 = vector.shape_cast %251 : vector<1x1x32xf32> to vector<1x32xf32>
    %253 = vector.broadcast %252 : vector<1x32xf32> to vector<16x32xf32>
    %254 = arith.mulf %250, %253 : vector<16x32xf32>
    %c1_112 = arith.constant 1 : index
    %c0_113 = arith.constant 0 : index
    %c0_114 = arith.constant 0 : index
    %255 = vector.load %arg11[%c1_112, %c0_113, %c0_114] : memref<2x1x32xf32, #tpu.memory_space<vmem>>, vector<1x1x32xf32>
    %256 = vector.shape_cast %255 : vector<1x1x32xf32> to vector<1x32xf32>
    %257 = vector.broadcast %256 : vector<1x32xf32> to vector<16x32xf32>
    %258 = arith.addf %254, %257 : vector<16x32xf32>
    %c1_115 = arith.constant 1 : index
    %c0_116 = arith.constant 0 : index
    %c0_117 = arith.constant 0 : index
    %259 = vector.load %arg12[%c1_115, %c0_116, %c0_117] : memref<2x32x64xf32, #tpu.memory_space<vmem>>, vector<1x32x64xf32>
    %260 = vector.shape_cast %259 : vector<1x32x64xf32> to vector<32x64xf32>
    %cst_118 = arith.constant dense<0.000000e+00> : vector<16x64xf32>
    %261 = tpu.matmul %258, %260, %cst_118 {dimension_numbers = #tpu.dot_dimension_numbers<[1], [0], [0], [1], [0, 0, 1, 1], [], []>} : vector<16x32xf32>, vector<32x64xf32>, vector<16x64xf32> -> vector<16x64xf32>
    %c1_119 = arith.constant 1 : index
    %c0_120 = arith.constant 0 : index
    %c0_121 = arith.constant 0 : index
    %262 = vector.load %arg13[%c1_119, %c0_120, %c0_121] : memref<2x1x64xf32, #tpu.memory_space<vmem>>, vector<1x1x64xf32>
    %263 = vector.shape_cast %262 : vector<1x1x64xf32> to vector<1x64xf32>
    %264 = vector.broadcast %263 : vector<1x64xf32> to vector<16x64xf32>
    %265 = arith.addf %261, %264 : vector<16x64xf32>
    %cst_122 = arith.constant 5.000000e-01 : f32
    %266 = vector.broadcast %cst_122 : f32 to vector<16x64xf32>
    %267 = arith.mulf %266, %265 : vector<16x64xf32>
    %cst_123 = arith.constant 0.707106769 : f32
    %268 = vector.broadcast %cst_123 : f32 to vector<16x64xf32>
    %269 = arith.mulf %265, %268 : vector<16x64xf32>
    %270 = math.erf %269 : vector<16x64xf32>
    %cst_124 = arith.constant 1.000000e+00 : f32
    %271 = vector.broadcast %cst_124 : f32 to vector<16x64xf32>
    %272 = arith.addf %271, %270 : vector<16x64xf32>
    %273 = arith.mulf %267, %272 : vector<16x64xf32>
    %c1_125 = arith.constant 1 : index
    %c0_126 = arith.constant 0 : index
    %c0_127 = arith.constant 0 : index
    %274 = vector.load %arg14[%c1_125, %c0_126, %c0_127] : memref<2x64x32xf32, #tpu.memory_space<vmem>>, vector<1x64x32xf32>
    %275 = vector.shape_cast %274 : vector<1x64x32xf32> to vector<64x32xf32>
    %cst_128 = arith.constant dense<0.000000e+00> : vector<16x32xf32>
    %276 = tpu.matmul %273, %275, %cst_128 {dimension_numbers = #tpu.dot_dimension_numbers<[1], [0], [0], [1], [0, 0, 1, 1], [], []>} : vector<16x64xf32>, vector<64x32xf32>, vector<16x32xf32> -> vector<16x32xf32>
    %c1_129 = arith.constant 1 : index
    %c0_130 = arith.constant 0 : index
    %c0_131 = arith.constant 0 : index
    %277 = vector.load %arg15[%c1_129, %c0_130, %c0_131] : memref<2x1x32xf32, #tpu.memory_space<vmem>>, vector<1x1x32xf32>
    %278 = vector.shape_cast %277 : vector<1x1x32xf32> to vector<1x32xf32>
    %279 = vector.broadcast %278 : vector<1x32xf32> to vector<16x32xf32>
    %280 = arith.addf %276, %279 : vector<16x32xf32>
    %281 = arith.addf %258, %280 : vector<16x32xf32>
    %c1_132 = arith.constant 1 : index
    %c0_133 = arith.constant 0 : index
    %c0_134 = arith.constant 0 : index
    %282 = vector.load %arg16[%c1_132, %c0_133, %c0_134] : memref<2x1x32xf32, #tpu.memory_space<vmem>>, vector<1x1x32xf32>
    %283 = vector.shape_cast %282 : vector<1x1x32xf32> to vector<1x32xf32>
    %284 = vector.broadcast %283 : vector<1x32xf32> to vector<16x32xf32>
    %285 = arith.mulf %281, %284 : vector<16x32xf32>
    %c1_135 = arith.constant 1 : index
    %c0_136 = arith.constant 0 : index
    %c0_137 = arith.constant 0 : index
    %286 = vector.load %arg17[%c1_135, %c0_136, %c0_137] : memref<2x1x32xf32, #tpu.memory_space<vmem>>, vector<1x1x32xf32>
    %287 = vector.shape_cast %286 : vector<1x1x32xf32> to vector<1x32xf32>
    %288 = vector.broadcast %287 : vector<1x32xf32> to vector<16x32xf32>
    %289 = arith.addf %285, %288 : vector<16x32xf32>
    %cst_138 = arith.constant 5.000000e-01 : f32
    %290 = vector.broadcast %cst_138 : f32 to vector<16x32xf32>
    %291 = arith.mulf %290, %289 : vector<16x32xf32>
    %cst_139 = arith.constant 0.707106769 : f32
    %292 = vector.broadcast %cst_139 : f32 to vector<16x32xf32>
    %293 = arith.mulf %289, %292 : vector<16x32xf32>
    %294 = math.erf %293 : vector<16x32xf32>
    %cst_140 = arith.constant 1.000000e+00 : f32
    %295 = vector.broadcast %cst_140 : f32 to vector<16x32xf32>
    %296 = arith.addf %295, %294 : vector<16x32xf32>
    %297 = arith.mulf %291, %296 : vector<16x32xf32>
    %c0_141 = arith.constant 0 : index
    %c0_142 = arith.constant 0 : index
    %298 = vector.load %arg2[%c0_141, %c0_142] : memref<16x1xf32, #tpu.memory_space<vmem>>, vector<16x1xf32>
    %299 = vector.broadcast %298 : vector<16x1xf32> to vector<16x32xf32>
    %300 = arith.mulf %297, %299 : vector<16x32xf32>
    %301 = vector.shape_cast %300 : vector<16x32xf32> to vector<2x8x32xf32>
    %cst_143 = arith.constant 0.000000e+00 : f32
    %302 = vector.broadcast %cst_143 : f32 to vector<2x128xf32>
    %303 = vector.extract_strided_slice %301 {offsets = [0, 0, 0], sizes = [2, 1, 32], strides = [1, 1, 1]} : vector<2x8x32xf32> to vector<2x1x32xf32>
    %304 = vector.shape_cast %303 : vector<2x1x32xf32> to vector<2x32xf32>
    %c0_144 = arith.constant 0 : index
    %c0_145 = arith.constant 0 : index
    %c0_146 = arith.constant 0 : index
    %305 = vector.load %arg18[%c0_144, %c0_145, %c0_146] : memref<8x32x128xf32, #tpu.memory_space<vmem>>, vector<1x32x128xf32>
    %306 = vector.shape_cast %305 : vector<1x32x128xf32> to vector<32x128xf32>
    %cst_147 = arith.constant dense<0.000000e+00> : vector<2x128xf32>
    %307 = tpu.matmul %304, %306, %cst_147 {dimension_numbers = #tpu.dot_dimension_numbers<[1], [0], [0], [1], [0, 0, 1, 1], [], []>} : vector<2x32xf32>, vector<32x128xf32>, vector<2x128xf32> -> vector<2x128xf32>
    %308 = arith.addf %302, %307 : vector<2x128xf32>
    %309 = vector.extract_strided_slice %301 {offsets = [0, 1, 0], sizes = [2, 1, 32], strides = [1, 1, 1]} : vector<2x8x32xf32> to vector<2x1x32xf32>
    %310 = vector.shape_cast %309 : vector<2x1x32xf32> to vector<2x32xf32>
    %c1_148 = arith.constant 1 : index
    %c0_149 = arith.constant 0 : index
    %c0_150 = arith.constant 0 : index
    %311 = vector.load %arg18[%c1_148, %c0_149, %c0_150] : memref<8x32x128xf32, #tpu.memory_space<vmem>>, vector<1x32x128xf32>
    %312 = vector.shape_cast %311 : vector<1x32x128xf32> to vector<32x128xf32>
    %cst_151 = arith.constant dense<0.000000e+00> : vector<2x128xf32>
    %313 = tpu.matmul %310, %312, %cst_151 {dimension_numbers = #tpu.dot_dimension_numbers<[1], [0], [0], [1], [0, 0, 1, 1], [], []>} : vector<2x32xf32>, vector<32x128xf32>, vector<2x128xf32> -> vector<2x128xf32>
    %314 = arith.addf %308, %313 : vector<2x128xf32>
    %315 = vector.extract_strided_slice %301 {offsets = [0, 2, 0], sizes = [2, 1, 32], strides = [1, 1, 1]} : vector<2x8x32xf32> to vector<2x1x32xf32>
    %316 = vector.shape_cast %315 : vector<2x1x32xf32> to vector<2x32xf32>
    %c2 = arith.constant 2 : index
    %c0_152 = arith.constant 0 : index
    %c0_153 = arith.constant 0 : index
    %317 = vector.load %arg18[%c2, %c0_152, %c0_153] : memref<8x32x128xf32, #tpu.memory_space<vmem>>, vector<1x32x128xf32>
    %318 = vector.shape_cast %317 : vector<1x32x128xf32> to vector<32x128xf32>
    %cst_154 = arith.constant dense<0.000000e+00> : vector<2x128xf32>
    %319 = tpu.matmul %316, %318, %cst_154 {dimension_numbers = #tpu.dot_dimension_numbers<[1], [0], [0], [1], [0, 0, 1, 1], [], []>} : vector<2x32xf32>, vector<32x128xf32>, vector<2x128xf32> -> vector<2x128xf32>
    %320 = arith.addf %314, %319 : vector<2x128xf32>
    %321 = vector.extract_strided_slice %301 {offsets = [0, 3, 0], sizes = [2, 1, 32], strides = [1, 1, 1]} : vector<2x8x32xf32> to vector<2x1x32xf32>
    %322 = vector.shape_cast %321 : vector<2x1x32xf32> to vector<2x32xf32>
    %c3 = arith.constant 3 : index
    %c0_155 = arith.constant 0 : index
    %c0_156 = arith.constant 0 : index
    %323 = vector.load %arg18[%c3, %c0_155, %c0_156] : memref<8x32x128xf32, #tpu.memory_space<vmem>>, vector<1x32x128xf32>
    %324 = vector.shape_cast %323 : vector<1x32x128xf32> to vector<32x128xf32>
    %cst_157 = arith.constant dense<0.000000e+00> : vector<2x128xf32>
    %325 = tpu.matmul %322, %324, %cst_157 {dimension_numbers = #tpu.dot_dimension_numbers<[1], [0], [0], [1], [0, 0, 1, 1], [], []>} : vector<2x32xf32>, vector<32x128xf32>, vector<2x128xf32> -> vector<2x128xf32>
    %326 = arith.addf %320, %325 : vector<2x128xf32>
    %327 = vector.extract_strided_slice %301 {offsets = [0, 4, 0], sizes = [2, 1, 32], strides = [1, 1, 1]} : vector<2x8x32xf32> to vector<2x1x32xf32>
    %328 = vector.shape_cast %327 : vector<2x1x32xf32> to vector<2x32xf32>
    %c4 = arith.constant 4 : index
    %c0_158 = arith.constant 0 : index
    %c0_159 = arith.constant 0 : index
    %329 = vector.load %arg18[%c4, %c0_158, %c0_159] : memref<8x32x128xf32, #tpu.memory_space<vmem>>, vector<1x32x128xf32>
    %330 = vector.shape_cast %329 : vector<1x32x128xf32> to vector<32x128xf32>
    %cst_160 = arith.constant dense<0.000000e+00> : vector<2x128xf32>
    %331 = tpu.matmul %328, %330, %cst_160 {dimension_numbers = #tpu.dot_dimension_numbers<[1], [0], [0], [1], [0, 0, 1, 1], [], []>} : vector<2x32xf32>, vector<32x128xf32>, vector<2x128xf32> -> vector<2x128xf32>
    %332 = arith.addf %326, %331 : vector<2x128xf32>
    %333 = vector.extract_strided_slice %301 {offsets = [0, 5, 0], sizes = [2, 1, 32], strides = [1, 1, 1]} : vector<2x8x32xf32> to vector<2x1x32xf32>
    %334 = vector.shape_cast %333 : vector<2x1x32xf32> to vector<2x32xf32>
    %c5 = arith.constant 5 : index
    %c0_161 = arith.constant 0 : index
    %c0_162 = arith.constant 0 : index
    %335 = vector.load %arg18[%c5, %c0_161, %c0_162] : memref<8x32x128xf32, #tpu.memory_space<vmem>>, vector<1x32x128xf32>
    %336 = vector.shape_cast %335 : vector<1x32x128xf32> to vector<32x128xf32>
    %cst_163 = arith.constant dense<0.000000e+00> : vector<2x128xf32>
    %337 = tpu.matmul %334, %336, %cst_163 {dimension_numbers = #tpu.dot_dimension_numbers<[1], [0], [0], [1], [0, 0, 1, 1], [], []>} : vector<2x32xf32>, vector<32x128xf32>, vector<2x128xf32> -> vector<2x128xf32>
    %338 = arith.addf %332, %337 : vector<2x128xf32>
    %339 = vector.extract_strided_slice %301 {offsets = [0, 6, 0], sizes = [2, 1, 32], strides = [1, 1, 1]} : vector<2x8x32xf32> to vector<2x1x32xf32>
    %340 = vector.shape_cast %339 : vector<2x1x32xf32> to vector<2x32xf32>
    %c6 = arith.constant 6 : index
    %c0_164 = arith.constant 0 : index
    %c0_165 = arith.constant 0 : index
    %341 = vector.load %arg18[%c6, %c0_164, %c0_165] : memref<8x32x128xf32, #tpu.memory_space<vmem>>, vector<1x32x128xf32>
    %342 = vector.shape_cast %341 : vector<1x32x128xf32> to vector<32x128xf32>
    %cst_166 = arith.constant dense<0.000000e+00> : vector<2x128xf32>
    %343 = tpu.matmul %340, %342, %cst_166 {dimension_numbers = #tpu.dot_dimension_numbers<[1], [0], [0], [1], [0, 0, 1, 1], [], []>} : vector<2x32xf32>, vector<32x128xf32>, vector<2x128xf32> -> vector<2x128xf32>
    %344 = arith.addf %338, %343 : vector<2x128xf32>
    %345 = vector.extract_strided_slice %301 {offsets = [0, 7, 0], sizes = [2, 1, 32], strides = [1, 1, 1]} : vector<2x8x32xf32> to vector<2x1x32xf32>
    %346 = vector.shape_cast %345 : vector<2x1x32xf32> to vector<2x32xf32>
    %c7 = arith.constant 7 : index
    %c0_167 = arith.constant 0 : index
    %c0_168 = arith.constant 0 : index
    %347 = vector.load %arg18[%c7, %c0_167, %c0_168] : memref<8x32x128xf32, #tpu.memory_space<vmem>>, vector<1x32x128xf32>
    %348 = vector.shape_cast %347 : vector<1x32x128xf32> to vector<32x128xf32>
    %cst_169 = arith.constant dense<0.000000e+00> : vector<2x128xf32>
    %349 = tpu.matmul %346, %348, %cst_169 {dimension_numbers = #tpu.dot_dimension_numbers<[1], [0], [0], [1], [0, 0, 1, 1], [], []>} : vector<2x32xf32>, vector<32x128xf32>, vector<2x128xf32> -> vector<2x128xf32>
    %350 = arith.addf %344, %349 : vector<2x128xf32>
    %c0_170 = arith.constant 0 : index
    %c0_171 = arith.constant 0 : index
    %351 = vector.load %arg19[%c0_170, %c0_171] : memref<1x128xf32, #tpu.memory_space<vmem>>, vector<1x128xf32>
    %352 = vector.broadcast %351 : vector<1x128xf32> to vector<2x128xf32>
    %353 = arith.addf %350, %352 : vector<2x128xf32>
    %c0_172 = arith.constant 0 : index
    %c0_173 = arith.constant 0 : index
    %354 = vector.load %arg20[%c0_172, %c0_173] : memref<2x128xf32, #tpu.memory_space<vmem>>, vector<2x128xf32>
    tpu.vector_store %arg20[%c0_172, %c0_173], %353 {strides = array<i32>} : memref<2x128xf32, #tpu.memory_space<vmem>>, vector<2x128xf32>,
    return
  }
}

</mosaic_0001>

<llo_original>
// kernel: _lambda_.1
$region0: #{_lambda_.1}
  #allocation0 [shape = 'u32[]', space=smem, size = 0x4, offset = 0x4, fixed_abs, tag = 'smem constant byte address 0x4 - core index']
  #allocation1 [shape = 'u32[72,128]{1,0:T(1,128)}', space=vmem, size = 0x9000, scoped, tag = 'internal scratch']
  %s0 = inlined_call_operand.vmem [shape: f32[2,8,4], index: 0, kind: input, shape index: {}]
  %s1 = inlined_call_operand.vmem [shape: f32[2,8], index: 1, kind: input, shape index: {}]
  %s2 = inlined_call_operand.vmem [shape: f32[16,1], index: 2, kind: input, shape index: {}]
  %s3 = inlined_call_operand.vmem [shape: f32[4,32], index: 3, kind: input, shape index: {}]
  %s4 = inlined_call_operand.vmem [shape: f32[1,32], index: 4, kind: input, shape index: {}]
  %s5 = inlined_call_operand.vmem [shape: f32[16,32], index: 5, kind: input, shape index: {}]
  %s6 = inlined_call_operand.hbm [shape: f32[2,32,96], index: 6, kind: input, shape index: {}]
  %s7 = inlined_call_operand.vmem [shape: f32[2,1,96], index: 7, kind: input, shape index: {}]
  %s8 = inlined_call_operand.hbm [shape: f32[2,32,32], index: 8, kind: input, shape index: {}]
  %s9 = inlined_call_operand.vmem [shape: f32[2,1,32], index: 9, kind: input, shape index: {}]
  %s10 = inlined_call_operand.vmem [shape: f32[2,1,32], index: 10, kind: input, shape index: {}]
  %s11 = inlined_call_operand.vmem [shape: f32[2,1,32], index: 11, kind: input, shape index: {}]
  %s12 = inlined_call_operand.hbm [shape: f32[2,32,64], index: 12, kind: input, shape index: {}]
  %s13 = inlined_call_operand.vmem [shape: f32[2,1,64], index: 13, kind: input, shape index: {}]
  %s14 = inlined_call_operand.hbm [shape: f32[2,64,32], index: 14, kind: input, shape index: {}]
  %s15 = inlined_call_operand.vmem [shape: f32[2,1,32], index: 15, kind: input, shape index: {}]
  %s16 = inlined_call_operand.vmem [shape: f32[2,1,32], index: 16, kind: input, shape index: {}]
  %s17 = inlined_call_operand.vmem [shape: f32[2,1,32], index: 17, kind: input, shape index: {}]
  %s18 = inlined_call_operand.hbm [shape: f32[8,32,128], index: 18, kind: input, shape index: {}]
  %s19 = inlined_call_operand.vmem [shape: f32[1,128], index: 19, kind: input, shape index: {}]
  %s20 = inlined_call_operand.hbm [shape: f32[2,128], index: 20, kind: output, shape index: {}]
  %s21 = sld [smem:[#allocation0]]
  $region110: #{_lambda_.1} parent=0
    _
  %s23 = ssub.s32 1, %s21
  %s24 = scalar_select 0, %s23, %s21
  $region1: #{_lambda_.1} parent=0
    #allocation2 [shape = 'u8[32768]{0}', space=vmem, size = 0x8000, scoped, tag = 'input window, operand 6, single buffered']
    #allocation3 [shape = 's32[1]{0}', space=sflag, size = 0x4, scoped, tag = 'scoped memory for _lambda_.1']
    #allocation4 [shape = 's32[1]{0}', space=sflag, size = 0x4, scoped, tag = 'scoped memory for _lambda_.1']
    #allocation5 [shape = 'u8[32768]{0}', space=vmem, size = 0x8000, scoped, tag = 'input window, operand 8, single buffered']
    #allocation6 [shape = 's32[1]{0}', space=sflag, size = 0x4, scoped, tag = 'scoped memory for _lambda_.1']
    #allocation7 [shape = 'u8[32768]{0}', space=vmem, size = 0x8000, scoped, tag = 'input window, operand 12, single buffered']
    #allocation8 [shape = 'u8[65536]{0}', space=vmem, size = 0x10000, scoped, tag = 'input window, operand 14, single buffered']
    #allocation9 [shape = 's32[1]{0}', space=sflag, size = 0x4, scoped, tag = 'scoped memory for _lambda_.1']
    #allocation10 [shape = 'u8[131072]{0}', space=vmem, size = 0x20000, scoped, tag = 'input window, operand 18, single buffered']
    #allocation11 [shape = 'u8[1024]{0}', space=vmem, size = 0x400, scoped, tag = 'output window, operand 0, single buffered']
    %25 = vsyncpa [#allocation3], 0
    %26 = vsyncpa [#allocation6], 0
    %27 = vsyncpa [#allocation9], 0
    %28 = vsyncpa [#allocation4], 0
    // Predicated region
    $region2: #{_lambda_.1} parent=1 // pred_check
      _
    $region3: #{_lambda_.1} parent=1 // pred_check_branch
      %30 = sbr.rel (0) target = $region5
    $region4: #{_lambda_.1} parent=1 // pred_region
      _
    $region5: #{_lambda_.1} parent=1 // pred_fallthru
      _
    // Predicated region
    $region6: #{_lambda_.1} parent=1 // pred_check
      _
    $region7: #{_lambda_.1} parent=1 // pred_check_branch
      %32 = sbr.rel (0) target = $region9
    $region8: #{_lambda_.1} parent=1 // pred_region
      _
    $region9: #{_lambda_.1} parent=1 // pred_fallthru
      _
    // Predicated region
    $region10: #{_lambda_.1} parent=1 // pred_check
      _
    $region11: #{_lambda_.1} parent=1 // pred_check_branch
      %34 = sbr.rel (0) target = $region13
    $region12: #{_lambda_.1} parent=1 // pred_region
      _
    $region13: #{_lambda_.1} parent=1 // pred_fallthru
      _
    // Predicated region
    $region14: #{_lambda_.1} parent=1 // pred_check
      _
    $region15: #{_lambda_.1} parent=1 // pred_check_branch
      %36 = sbr.rel (0) target = $region17
    $region16: #{_lambda_.1} parent=1 // pred_region
      _
    $region17: #{_lambda_.1} parent=1 // pred_fallthru
      _
    // Predicated region
    $region18: #{_lambda_.1} parent=1 // pred_check
      _
    $region19: #{_lambda_.1} parent=1 // pred_check_branch
      %38 = sbr.rel (0) target = $region21
    $region20: #{_lambda_.1} parent=1 // pred_region
      _
    $region21: #{_lambda_.1} parent=1 // pred_fallthru
      _
    // Predicated region
    $region22: #{_lambda_.1} parent=1 // pred_check
      _
    $region23: #{_lambda_.1} parent=1 // pred_check_branch
      %40 = sbr.rel (0) target = $region25
    $region24: #{_lambda_.1} parent=1 // pred_region
      _
    $region25: #{_lambda_.1} parent=1 // pred_fallthru
      _
    // Predicated region
    $region26: #{_lambda_.1} parent=1 // pred_check
      _
    $region27: #{_lambda_.1} parent=1 // pred_check_branch
      %42 = sbr.rel (0) target = $region29
    $region28: #{_lambda_.1} parent=1 // pred_region
      %44 = vsyncadd [#allocation3], 0
      %s45 = sshll.u32 %s6, 4
      %s46 = int_to_ptr.hbm [resolvable:$true] %s45
      %s47 = sshll.u32 [#allocation2], 4
      %s48 = int_to_ptr.vmem [resolvable:$true] %s47
      %53 = dma.hbm_to_vmem [thread:$0]  %s46, 1024, %s48, [#allocation3], 128, 128, 8
    $region29: #{_lambda_.1} parent=1 // pred_fallthru
      _
    // Predicated region
    $region30: #{_lambda_.1} parent=1 // pred_check
      _
    $region31: #{_lambda_.1} parent=1 // pred_check_branch
      %55 = sbr.rel (0) target = $region33
    $region32: #{_lambda_.1} parent=1 // pred_region
      _
    $region33: #{_lambda_.1} parent=1 // pred_fallthru
      _
    // Predicated region
    $region34: #{_lambda_.1} parent=1 // pred_check
      _
    $region35: #{_lambda_.1} parent=1 // pred_check_branch
      %57 = sbr.rel (0) target = $region37
    $region36: #{_lambda_.1} parent=1 // pred_region
      %59 = vsyncadd [#allocation6], 0
      %s60 = sshll.u32 %s8, 4
      %s61 = int_to_ptr.hbm [resolvable:$true] %s60
      %s62 = sshll.u32 [#allocation5], 4
      %s63 = int_to_ptr.vmem [resolvable:$true] %s62
      %68 = dma.hbm_to_vmem [thread:$0]  %s61, 1024, %s63, [#allocation6], 128, 128, 8
    $region37: #{_lambda_.1} parent=1 // pred_fallthru
      _
    // Predicated region
    $region38: #{_lambda_.1} parent=1 // pred_check
      _
    $region39: #{_lambda_.1} parent=1 // pred_check_branch
      %70 = sbr.rel (0) target = $region41
    $region40: #{_lambda_.1} parent=1 // pred_region
      _
    $region41: #{_lambda_.1} parent=1 // pred_fallthru
      _
    // Predicated region
    $region42: #{_lambda_.1} parent=1 // pred_check
      _
    $region43: #{_lambda_.1} parent=1 // pred_check_branch
      %72 = sbr.rel (0) target = $region45
    $region44: #{_lambda_.1} parent=1 // pred_region
      _
    $region45: #{_lambda_.1} parent=1 // pred_fallthru
      _
    // Predicated region
    $region46: #{_lambda_.1} parent=1 // pred_check
      _
    $region47: #{_lambda_.1} parent=1 // pred_check_branch
      %74 = sbr.rel (0) target = $region49
    $region48: #{_lambda_.1} parent=1 // pred_region
      _
    $region49: #{_lambda_.1} parent=1 // pred_fallthru
      _
    // Predicated region
    $region50: #{_lambda_.1} parent=1 // pred_check
      _
    $region51: #{_lambda_.1} parent=1 // pred_check_branch
      %76 = sbr.rel (0) target = $region53
    $region52: #{_lambda_.1} parent=1 // pred_region
      %78 = vsyncadd [#allocation6], 0
      %s79 = sshll.u32 %s12, 4
      %s80 = int_to_ptr.hbm [resolvable:$true] %s79
      %s81 = sshll.u32 [#allocation7], 4
      %s82 = int_to_ptr.vmem [resolvable:$true] %s81
      %87 = dma.hbm_to_vmem [thread:$0]  %s80, 1024, %s82, [#allocation6], 128, 128, 8
    $region53: #{_lambda_.1} parent=1 // pred_fallthru
      _
    // Predicated region
    $region54: #{_lambda_.1} parent=1 // pred_check
      _
    $region55: #{_lambda_.1} parent=1 // pred_check_branch
      %89 = sbr.rel (0) target = $region57
    $region56: #{_lambda_.1} parent=1 // pred_region
      _
    $region57: #{_lambda_.1} parent=1 // pred_fallthru
      _
    // Predicated region
    $region58: #{_lambda_.1} parent=1 // pred_check
      _
    $region59: #{_lambda_.1} parent=1 // pred_check_branch
      %91 = sbr.rel (0) target = $region61
    $region60: #{_lambda_.1} parent=1 // pred_region
      %93 = vsyncadd [#allocation9], 0
      %s94 = sshll.u32 %s14, 4
      %s95 = int_to_ptr.hbm [resolvable:$true] %s94
      %s96 = sshll.u32 [#allocation8], 4
      %s97 = int_to_ptr.vmem [resolvable:$true] %s96
      %102 = dma.hbm_to_vmem [thread:$0]  %s95, 2048, %s97, [#allocation9], 128, 128, 8
    $region61: #{_lambda_.1} parent=1 // pred_fallthru
      _
    // Predicated region
    $region62: #{_lambda_.1} parent=1 // pred_check
      _
    $region63: #{_lambda_.1} parent=1 // pred_check_branch
      %104 = sbr.rel (0) target = $region65
    $region64: #{_lambda_.1} parent=1 // pred_region
      _
    $region65: #{_lambda_.1} parent=1 // pred_fallthru
      _
    // Predicated region
    $region66: #{_lambda_.1} parent=1 // pred_check
      _
    $region67: #{_lambda_.1} parent=1 // pred_check_branch
      %106 = sbr.rel (0) target = $region69
    $region68: #{_lambda_.1} parent=1 // pred_region
      _
    $region69: #{_lambda_.1} parent=1 // pred_fallthru
      _
    // Predicated region
    $region70: #{_lambda_.1} parent=1 // pred_check
      _
    $region71: #{_lambda_.1} parent=1 // pred_check_branch
      %108 = sbr.rel (0) target = $region73
    $region72: #{_lambda_.1} parent=1 // pred_region
      _
    $region73: #{_lambda_.1} parent=1 // pred_fallthru
      _
    // Predicated region
    $region74: #{_lambda_.1} parent=1 // pred_check
      _
    $region75: #{_lambda_.1} parent=1 // pred_check_branch
      %110 = sbr.rel (0) target = $region77
    $region76: #{_lambda_.1} parent=1 // pred_region
      %112 = vsyncadd [#allocation9], 0
      %s113 = sshll.u32 %s18, 4
      %s114 = int_to_ptr.hbm [resolvable:$true] %s113
      %s115 = sshll.u32 [#allocation10], 4
      %s116 = int_to_ptr.vmem [resolvable:$true] %s115
      %121 = dma.hbm_to_vmem [thread:$0]  %s114, 4096, %s116, [#allocation9], 128, 128, 8
    $region77: #{_lambda_.1} parent=1 // pred_fallthru
      _
    // Predicated region
    $region78: #{_lambda_.1} parent=1 // pred_check
      _
    $region79: #{_lambda_.1} parent=1 // pred_check_branch
      %123 = sbr.rel (0) target = $region81
    $region80: #{_lambda_.1} parent=1 // pred_region
      _
    $region81: #{_lambda_.1} parent=1 // pred_fallthru
      _
    // Predicated region
    $region82: #{_lambda_.1} parent=1 // pred_check
      _
    $region83: #{_lambda_.1} parent=1 // pred_check_branch
      %125 = sbr.rel (0) target = $region85
    $region84: #{_lambda_.1} parent=1 // pred_region
      %127 = dma.done [#allocation3], 1024
    $region85: #{_lambda_.1} parent=1 // pred_fallthru
      _
    // Predicated region
    $region86: #{_lambda_.1} parent=1 // pred_check
      _
    $region87: #{_lambda_.1} parent=1 // pred_check_branch
      %129 = sbr.rel (0) target = $region89
    $region88: #{_lambda_.1} parent=1 // pred_region
      %131 = dma.done [#allocation6], 1024
    $region89: #{_lambda_.1} parent=1 // pred_fallthru
      _
    // Predicated region
    $region90: #{_lambda_.1} parent=1 // pred_check
      _
    $region91: #{_lambda_.1} parent=1 // pred_check_branch
      %133 = sbr.rel (0) target = $region93
    $region92: #{_lambda_.1} parent=1 // pred_region
      %135 = dma.done [#allocation6], 1024
    $region93: #{_lambda_.1} parent=1 // pred_fallthru
      _
    // Predicated region
    $region94: #{_lambda_.1} parent=1 // pred_check
      _
    $region95: #{_lambda_.1} parent=1 // pred_check_branch
      %137 = sbr.rel (0) target = $region97
    $region96: #{_lambda_.1} parent=1 // pred_region
      %139 = dma.done [#allocation9], 2048
    $region97: #{_lambda_.1} parent=1 // pred_fallthru
      _
    // Predicated region
    $region98: #{_lambda_.1} parent=1 // pred_check
      _
    $region99: #{_lambda_.1} parent=1 // pred_check_branch
      %141 = sbr.rel (0) target = $region101
    $region100: #{_lambda_.1} parent=1 // pred_region
      %143 = dma.done [#allocation9], 4096
    $region101: #{_lambda_.1} parent=1 // pred_fallthru
      _
    %v144 = vld [vmem:[%s1] sm:$0x3]
    %v145 = vsub.f32 %v144, 1.0
    %v146 = vmul.f32 %v145, 1e+30
    %v147 = vld [vmem:[%s0] sm:$0xff]
    %v148 = vld [vmem:[%s0 + $0x8] sm:$0xff]
    %v149 = vld [vmem:[%s3] sm:$0xf]
    %v150 = vld [vmem:[%s4] sm:$0x1]
    %v152 = vperm.slane %v150, 0
    %vm154 = vcmask 31744
    %v156 = vsel %vm154, %v147, 0
    %v159 = vsel %vm154, %v148, 0
    %vm161 = vcmask 1043456
    %v163 = vsel %vm161, %v149, 0
    %165 = vmatpush.msra.mxu0 0.0
    %166 = vmatpush.msra.mxu0 0.0
    %167 = vmatpush.msra.mxu0 0.0
    %168 = vmatpush.msra.mxu0 0.0
    %169 = vmatpush.msra.mxu0 0.0
    %170 = vmatpush.msra.mxu0 0.0
    %171 = vmatpush.msra.mxu0 0.0
    %172 = vmatpush.msra.mxu0 0.0
    %173 = vmatpush.msra.mxu0 0.0
    %174 = vmatpush.msra.mxu0 0.0
    %175 = vmatpush.msra.mxu0 0.0
    %176 = vmatpush.msra.mxu0 0.0
    %177 = vmatpush.msra.mxu0 0.0
    %178 = vmatpush.msra.mxu0 0.0
    %179 = vmatpush.msra.mxu0 0.0
    %180 = vmatpush.msra.mxu0 %v163
    %181 = vmatmul.f32.gmra.mxu0 %v156
    %v182 = vpop.f32.mrf.mxu0
    %v183 = vadd.f32 %v152, %v182
    %184 = vmatmul.f32.gmra.mxu0 %v159
    %v185 = vpop.f32.mrf.mxu0
    %v186 = vadd.f32 %v152, %v185
    %187 = vdwg.mxu0
    %v188 = vmul.f32 %v183, 5.656854
    %v189 = vmul.f32 %v186, 5.656854
    %v190 = vld [vmem:[%s5] sm:$0xff]
    %v191 = vld [vmem:[%s5 + $0x8] sm:$0xff]
    %v192 = vadd.f32 %v188, %v190
    %v193 = vadd.f32 %v189, %v191
    %v194 = vld [vmem:[#allocation2] sm:$0xff]
    %v195 = vld [vmem:[#allocation2 + $0x8] sm:$0xff]
    %v196 = vld [vmem:[#allocation2 + $0x10] sm:$0xff]
    %v197 = vld [vmem:[#allocation2 + $0x18] sm:$0xff]
    %v198 = vld [vmem:[%s7] sm:$0x1]
    %v200 = vperm.slane %v198, 0
    %vm202 = vcmask 261120
    %v204 = vsel %vm202, %v192, 0
    %v207 = vsel %vm202, %v193, 0
    %209 = vmatpush.msra.mxu0 0.0
    %210 = vmatpush.msra.mxu0 0.0
    %211 = vmatpush.msra.mxu0 0.0
    %212 = vmatpush.msra.mxu0 0.0
    %213 = vmatpush.msra.mxu0 0.0
    %214 = vmatpush.msra.mxu0 0.0
    %215 = vmatpush.msra.mxu0 0.0
    %216 = vmatpush.msra.mxu0 0.0
    %217 = vmatpush.msra.mxu0 0.0
    %218 = vmatpush.msra.mxu0 0.0
    %219 = vmatpush.msra.mxu0 0.0
    %220 = vmatpush.msra.mxu0 0.0
    %221 = vmatpush.msra.mxu0 %v197
    %222 = vmatpush.msra.mxu0 %v196
    %223 = vmatpush.msra.mxu0 %v195
    %224 = vmatpush.msra.mxu0 %v194
    %225 = vmatmul.f32.gmra.mxu0 %v204
    %v226 = vpop.f32.mrf.mxu0
    %v227 = vadd.f32 %v200, %v226
    %228 = vmatmul.f32.gmra.mxu0 %v207
    %v229 = vpop.f32.mrf.mxu0
    %v230 = vadd.f32 %v200, %v229
    %231 = vdwg.mxu0
    %v232 = vmul.f32 %v227, 0.35355338
    %v233 = vmul.f32 %v230, 0.35355338
    %v235 = vrot.slane %v146, 1
    %v236 = vperm.slane %v146, 0
    %v237 = vperm.slane %v235, 0
    %241 = vrot.lane.b32.xlu0 %v227, 96
    %v242 = vpop.permute.xlu0 %241
    %vm243 = vcmask 64512
    %v245 = vsel %vm243, %v232, 0
    %v247 = vsel %vm243, %v242, 0
    %249 = vmatpush.xpose.msra.mxu0 0.0
    %250 = vmatpush.xpose.msra.mxu0 0.0
    %251 = vmatpush.xpose.msra.mxu0 0.0
    %252 = vmatpush.xpose.msra.mxu0 0.0
    %253 = vmatpush.xpose.msra.mxu0 0.0
    %254 = vmatpush.xpose.msra.mxu0 0.0
    %255 = vmatpush.xpose.msra.mxu0 0.0
    %256 = vmatpush.xpose.msra.mxu0 0.0
    %257 = vmatpush.xpose.msra.mxu0 0.0
    %258 = vmatpush.xpose.msra.mxu0 0.0
    %259 = vmatpush.xpose.msra.mxu0 0.0
    %260 = vmatpush.xpose.msra.mxu0 0.0
    %261 = vmatpush.xpose.msra.mxu0 0.0
    %262 = vmatpush.xpose.msra.mxu0 0.0
    %263 = vmatpush.xpose.msra.mxu0 0.0
    %264 = vmatpush.xpose.msra.mxu0 %v247
    %265 = vmatmul.f32.gmra.mxu0 %v245
    %v266 = vpop.f32.mrf.mxu0
    %v267 = vadd.f32 %v236, %v266
    %268 = vdwg.mxu0
    %270 = vrot.lane.b32.xlu0 %v230, 96
    %v271 = vpop.permute.xlu0 %270
    %v273 = vsel %vm243, %v233, 0
    %v275 = vsel %vm243, %v271, 0
    %277 = vmatpush.xpose.msra.mxu0 0.0
    %278 = vmatpush.xpose.msra.mxu0 0.0
    %279 = vmatpush.xpose.msra.mxu0 0.0
    %280 = vmatpush.xpose.msra.mxu0 0.0
    %281 = vmatpush.xpose.msra.mxu0 0.0
    %282 = vmatpush.xpose.msra.mxu0 0.0
    %283 = vmatpush.xpose.msra.mxu0 0.0
    %284 = vmatpush.xpose.msra.mxu0 0.0
    %285 = vmatpush.xpose.msra.mxu0 0.0
    %286 = vmatpush.xpose.msra.mxu0 0.0
    %287 = vmatpush.xpose.msra.mxu0 0.0
    %288 = vmatpush.xpose.msra.mxu0 0.0
    %289 = vmatpush.xpose.msra.mxu0 0.0
    %290 = vmatpush.xpose.msra.mxu0 0.0
    %291 = vmatpush.xpose.msra.mxu0 0.0
    %292 = vmatpush.xpose.msra.mxu0 %v275
    %293 = vmatmul.f32.gmra.mxu0 %v273
    %v294 = vpop.f32.mrf.mxu0
    %v295 = vadd.f32 %v237, %v294
    %296 = vdwg.mxu0
    %v297 = vsel %vm243, %v267, -inf
    %298 = vmax.xlane.f32.xlu0 %v297
    %v299 = vpop.xlane.xlu0 %298
    %v300 = vsel %vm243, %v295, -inf
    %301 = vmax.xlane.f32.xlu0 %v300
    %v302 = vpop.xlane.xlu0 %301
    %v303 = vsub.f32 %v267, %v299
    %v304 = vsub.f32 %v295, %v302
    %v305 = vmul.f32 %v303, 1.442695
    %v306 = vpow.pop %v305
    %v307 = vmul.f32 %v304, 1.442695
    %v308 = vpow.pop %v307
    %v309 = vsel %vm243, %v306, 0.0
    %310 = vadd.xlane.f32.xlu0 %v309
    %v311 = vpop.xlane.xlu0 %310
    %v312 = vsel %vm243, %v308, 0.0
    %313 = vadd.xlane.f32.xlu0 %v312
    %v314 = vpop.xlane.xlu0 %313
    %v315 = vrcp.pop %v311
    %v316 = vrcp.pop %v314
    %v317 = vmul.f32 %v306, %v315
    %v318 = vmul.f32 %v308, %v316
    %319 = vrot.lane.b32.xlu0 %v227, 64
    %v320 = vpop.permute.xlu0 %319
    %v323 = vsel %vm243, %v317, 0
    %325 = vmatpush.msra.mxu0 0.0
    %326 = vmatpush.msra.mxu0 0.0
    %327 = vmatpush.msra.mxu0 0.0
    %328 = vmatpush.msra.mxu0 0.0
    %329 = vmatpush.msra.mxu0 0.0
    %330 = vmatpush.msra.mxu0 0.0
    %331 = vmatpush.msra.mxu0 0.0
    %332 = vmatpush.msra.mxu0 0.0
    %333 = vmatpush.msra.mxu0 0.0
    %334 = vmatpush.msra.mxu0 0.0
    %335 = vmatpush.msra.mxu0 0.0
    %336 = vmatpush.msra.mxu0 0.0
    %337 = vmatpush.msra.mxu0 0.0
    %338 = vmatpush.msra.mxu0 0.0
    %339 = vmatpush.msra.mxu0 0.0
    %340 = vmatpush.msra.mxu0 %v320
    %341 = vmatmul.f32.gmra.mxu0 %v323
    %v342 = vpop.f32.mrf.mxu0
    %v343 = vadd.f32 0.0, %v342
    %344 = vdwg.mxu0
    %345 = vrot.lane.b32.xlu0 %v230, 64
    %v346 = vpop.permute.xlu0 %345
    %v349 = vsel %vm243, %v318, 0
    %351 = vmatpush.msra.mxu0 0.0
    %352 = vmatpush.msra.mxu0 0.0
    %353 = vmatpush.msra.mxu0 0.0
    %354 = vmatpush.msra.mxu0 0.0
    %355 = vmatpush.msra.mxu0 0.0
    %356 = vmatpush.msra.mxu0 0.0
    %357 = vmatpush.msra.mxu0 0.0
    %358 = vmatpush.msra.mxu0 0.0
    %359 = vmatpush.msra.mxu0 0.0
    %360 = vmatpush.msra.mxu0 0.0
    %361 = vmatpush.msra.mxu0 0.0
    %362 = vmatpush.msra.mxu0 0.0
    %363 = vmatpush.msra.mxu0 0.0
    %364 = vmatpush.msra.mxu0 0.0
    %365 = vmatpush.msra.mxu0 0.0
    %366 = vmatpush.msra.mxu0 %v346
    %367 = vmatmul.f32.gmra.mxu0 %v349
    %v368 = vpop.f32.mrf.mxu0
    %v369 = vadd.f32 0.0, %v368
    %370 = vdwg.mxu0
    %371 = vrot.lane.b32.xlu0 %v232, 120
    %v372 = vpop.permute.xlu0 %371
    %373 = vrot.lane.b32.xlu0 %v227, 88
    %v374 = vpop.permute.xlu0 %373
    %v375 = vsel %vm243, %v372, 0
    %v377 = vsel %vm243, %v374, 0
    %379 = vmatpush.xpose.msra.mxu0 0.0
    %380 = vmatpush.xpose.msra.mxu0 0.0
    %381 = vmatpush.xpose.msra.mxu0 0.0
    %382 = vmatpush.xpose.msra.mxu0 0.0
    %383 = vmatpush.xpose.msra.mxu0 0.0
    %384 = vmatpush.xpose.msra.mxu0 0.0
    %385 = vmatpush.xpose.msra.mxu0 0.0
    %386 = vmatpush.xpose.msra.mxu0 0.0
    %387 = vmatpush.xpose.msra.mxu0 0.0
    %388 = vmatpush.xpose.msra.mxu0 0.0
    %389 = vmatpush.xpose.msra.mxu0 0.0
    %390 = vmatpush.xpose.msra.mxu0 0.0
    %391 = vmatpush.xpose.msra.mxu0 0.0
    %392 = vmatpush.xpose.msra.mxu0 0.0
    %393 = vmatpush.xpose.msra.mxu0 0.0
    %394 = vmatpush.xpose.msra.mxu0 %v377
    %395 = vmatmul.f32.gmra.mxu0 %v375
    %v396 = vpop.f32.mrf.mxu0
    %v397 = vadd.f32 %v236, %v396
    %398 = vdwg.mxu0
    %399 = vrot.lane.b32.xlu0 %v233, 120
    %v400 = vpop.permute.xlu0 %399
    %401 = vrot.lane.b32.xlu0 %v230, 88
    %v402 = vpop.permute.xlu0 %401
    %v403 = vsel %vm243, %v400, 0
    %v405 = vsel %vm243, %v402, 0
    %407 = vmatpush.xpose.msra.mxu0 0.0
    %408 = vmatpush.xpose.msra.mxu0 0.0
    %409 = vmatpush.xpose.msra.mxu0 0.0
    %410 = vmatpush.xpose.msra.mxu0 0.0
    %411 = vmatpush.xpose.msra.mxu0 0.0
    %412 = vmatpush.xpose.msra.mxu0 0.0
    %413 = vmatpush.xpose.msra.mxu0 0.0
    %414 = vmatpush.xpose.msra.mxu0 0.0
    %415 = vmatpush.xpose.msra.mxu0 0.0
    %416 = vmatpush.xpose.msra.mxu0 0.0
    %417 = vmatpush.xpose.msra.mxu0 0.0
    %418 = vmatpush.xpose.msra.mxu0 0.0
    %419 = vmatpush.xpose.msra.mxu0 0.0
    %420 = vmatpush.xpose.msra.mxu0 0.0
    %421 = vmatpush.xpose.msra.mxu0 0.0
    %422 = vmatpush.xpose.msra.mxu0 %v405
    %423 = vmatmul.f32.gmra.mxu0 %v403
    %v424 = vpop.f32.mrf.mxu0
    %v425 = vadd.f32 %v237, %v424
    %426 = vdwg.mxu0
    %v427 = vsel %vm243, %v397, -inf
    %428 = vmax.xlane.f32.xlu0 %v427
    %v429 = vpop.xlane.xlu0 %428
    %v430 = vsel %vm243, %v425, -inf
    %431 = vmax.xlane.f32.xlu0 %v430
    %v432 = vpop.xlane.xlu0 %431
    %v433 = vsub.f32 %v397, %v429
    %v434 = vsub.f32 %v425, %v432
    %v435 = vmul.f32 %v433, 1.442695
    %v436 = vpow.pop %v435
    %v437 = vmul.f32 %v434, 1.442695
    %v438 = vpow.pop %v437
    %v439 = vsel %vm243, %v436, 0.0
    %440 = vadd.xlane.f32.xlu0 %v439
    %v441 = vpop.xlane.xlu0 %440
    %v442 = vsel %vm243, %v438, 0.0
    %443 = vadd.xlane.f32.xlu0 %v442
    %v444 = vpop.xlane.xlu0 %443
    %v445 = vrcp.pop %v441
    %v446 = vrcp.pop %v444
    %v447 = vmul.f32 %v436, %v445
    %v448 = vmul.f32 %v438, %v446
    %449 = vrot.lane.b32.xlu0 %v227, 56
    %v450 = vpop.permute.xlu0 %449
    %v453 = vsel %vm243, %v447, 0
    %455 = vmatpush.msra.mxu0 0.0
    %456 = vmatpush.msra.mxu0 0.0
    %457 = vmatpush.msra.mxu0 0.0
    %458 = vmatpush.msra.mxu0 0.0
    %459 = vmatpush.msra.mxu0 0.0
    %460 = vmatpush.msra.mxu0 0.0
    %461 = vmatpush.msra.mxu0 0.0
    %462 = vmatpush.msra.mxu0 0.0
    %463 = vmatpush.msra.mxu0 0.0
    %464 = vmatpush.msra.mxu0 0.0
    %465 = vmatpush.msra.mxu0 0.0
    %466 = vmatpush.msra.mxu0 0.0
    %467 = vmatpush.msra.mxu0 0.0
    %468 = vmatpush.msra.mxu0 0.0
    %469 = vmatpush.msra.mxu0 0.0
    %470 = vmatpush.msra.mxu0 %v450
    %471 = vmatmul.f32.gmra.mxu0 %v453
    %v472 = vpop.f32.mrf.mxu0
    %v473 = vadd.f32 0.0, %v472
    %474 = vdwg.mxu0
    %475 = vrot.lane.b32.xlu0 %v230, 56
    %v476 = vpop.permute.xlu0 %475
    %v479 = vsel %vm243, %v448, 0
    %481 = vmatpush.msra.mxu0 0.0
    %482 = vmatpush.msra.mxu0 0.0
    %483 = vmatpush.msra.mxu0 0.0
    %484 = vmatpush.msra.mxu0 0.0
    %485 = vmatpush.msra.mxu0 0.0
    %486 = vmatpush.msra.mxu0 0.0
    %487 = vmatpush.msra.mxu0 0.0
    %488 = vmatpush.msra.mxu0 0.0
    %489 = vmatpush.msra.mxu0 0.0
    %490 = vmatpush.msra.mxu0 0.0
    %491 = vmatpush.msra.mxu0 0.0
    %492 = vmatpush.msra.mxu0 0.0
    %493 = vmatpush.msra.mxu0 0.0
    %494 = vmatpush.msra.mxu0 0.0
    %495 = vmatpush.msra.mxu0 0.0
    %496 = vmatpush.msra.mxu0 %v476
    %497 = vmatmul.f32.gmra.mxu0 %v479
    %v498 = vpop.f32.mrf.mxu0
    %v499 = vadd.f32 0.0, %v498
    %500 = vdwg.mxu0
    %501 = vrot.lane.b32.xlu0 %v232, 112
    %v502 = vpop.permute.xlu0 %501
    %503 = vrot.lane.b32.xlu0 %v227, 80
    %v504 = vpop.permute.xlu0 %503
    %v505 = vsel %vm243, %v502, 0
    %v507 = vsel %vm243, %v504, 0
    %509 = vmatpush.xpose.msra.mxu0 0.0
    %510 = vmatpush.xpose.msra.mxu0 0.0
    %511 = vmatpush.xpose.msra.mxu0 0.0
    %512 = vmatpush.xpose.msra.mxu0 0.0
    %513 = vmatpush.xpose.msra.mxu0 0.0
    %514 = vmatpush.xpose.msra.mxu0 0.0
    %515 = vmatpush.xpose.msra.mxu0 0.0
    %516 = vmatpush.xpose.msra.mxu0 0.0
    %517 = vmatpush.xpose.msra.mxu0 0.0
    %518 = vmatpush.xpose.msra.mxu0 0.0
    %519 = vmatpush.xpose.msra.mxu0 0.0
    %520 = vmatpush.xpose.msra.mxu0 0.0
    %521 = vmatpush.xpose.msra.mxu0 0.0
    %522 = vmatpush.xpose.msra.mxu0 0.0
    %523 = vmatpush.xpose.msra.mxu0 0.0
    %524 = vmatpush.xpose.msra.mxu0 %v507
    %525 = vmatmul.f32.gmra.mxu0 %v505
    %v526 = vpop.f32.mrf.mxu0
    %v527 = vadd.f32 %v236, %v526
    %528 = vdwg.mxu0
    %529 = vrot.lane.b32.xlu0 %v233, 112
    %v530 = vpop.permute.xlu0 %529
    %531 = vrot.lane.b32.xlu0 %v230, 80
    %v532 = vpop.permute.xlu0 %531
    %v533 = vsel %vm243, %v530, 0
    %v535 = vsel %vm243, %v532, 0
    %537 = vmatpush.xpose.msra.mxu0 0.0
    %538 = vmatpush.xpose.msra.mxu0 0.0
    %539 = vmatpush.xpose.msra.mxu0 0.0
    %540 = vmatpush.xpose.msra.mxu0 0.0
    %541 = vmatpush.xpose.msra.mxu0 0.0
    %542 = vmatpush.xpose.msra.mxu0 0.0
    %543 = vmatpush.xpose.msra.mxu0 0.0
    %544 = vmatpush.xpose.msra.mxu0 0.0
    %545 = vmatpush.xpose.msra.mxu0 0.0
    %546 = vmatpush.xpose.msra.mxu0 0.0
    %547 = vmatpush.xpose.msra.mxu0 0.0
    %548 = vmatpush.xpose.msra.mxu0 0.0
    %549 = vmatpush.xpose.msra.mxu0 0.0
    %550 = vmatpush.xpose.msra.mxu0 0.0
    %551 = vmatpush.xpose.msra.mxu0 0.0
    %552 = vmatpush.xpose.msra.mxu0 %v535
    %553 = vmatmul.f32.gmra.mxu0 %v533
    %v554 = vpop.f32.mrf.mxu0
    %v555 = vadd.f32 %v237, %v554
    %556 = vdwg.mxu0
    %v557 = vsel %vm243, %v527, -inf
    %558 = vmax.xlane.f32.xlu0 %v557
    %v559 = vpop.xlane.xlu0 %558
    %v560 = vsel %vm243, %v555, -inf
    %561 = vmax.xlane.f32.xlu0 %v560
    %v562 = vpop.xlane.xlu0 %561
    %v563 = vsub.f32 %v527, %v559
    %v564 = vsub.f32 %v555, %v562
    %v565 = vmul.f32 %v563, 1.442695
    %v566 = vpow.pop %v565
    %v567 = vmul.f32 %v564, 1.442695
    %v568 = vpow.pop %v567
    %v569 = vsel %vm243, %v566, 0.0
    %570 = vadd.xlane.f32.xlu0 %v569
    %v571 = vpop.xlane.xlu0 %570
    %v572 = vsel %vm243, %v568, 0.0
    %573 = vadd.xlane.f32.xlu0 %v572
    %v574 = vpop.xlane.xlu0 %573
    %v575 = vrcp.pop %v571
    %v576 = vrcp.pop %v574
    %v577 = vmul.f32 %v566, %v575
    %v578 = vmul.f32 %v568, %v576
    %579 = vrot.lane.b32.xlu0 %v227, 48
    %v580 = vpop.permute.xlu0 %579
    %v583 = vsel %vm243, %v577, 0
    %585 = vmatpush.msra.mxu0 0.0
    %586 = vmatpush.msra.mxu0 0.0
    %587 = vmatpush.msra.mxu0 0.0
    %588 = vmatpush.msra.mxu0 0.0
    %589 = vmatpush.msra.mxu0 0.0
    %590 = vmatpush.msra.mxu0 0.0
    %591 = vmatpush.msra.mxu0 0.0
    %592 = vmatpush.msra.mxu0 0.0
    %593 = vmatpush.msra.mxu0 0.0
    %594 = vmatpush.msra.mxu0 0.0
    %595 = vmatpush.msra.mxu0 0.0
    %596 = vmatpush.msra.mxu0 0.0
    %597 = vmatpush.msra.mxu0 0.0
    %598 = vmatpush.msra.mxu0 0.0
    %599 = vmatpush.msra.mxu0 0.0
    %600 = vmatpush.msra.mxu0 %v580
    %601 = vmatmul.f32.gmra.mxu0 %v583
    %v602 = vpop.f32.mrf.mxu0
    %v603 = vadd.f32 0.0, %v602
    %604 = vdwg.mxu0
    %605 = vrot.lane.b32.xlu0 %v230, 48
    %v606 = vpop.permute.xlu0 %605
    %v609 = vsel %vm243, %v578, 0
    %611 = vmatpush.msra.mxu0 0.0
    %612 = vmatpush.msra.mxu0 0.0
    %613 = vmatpush.msra.mxu0 0.0
    %614 = vmatpush.msra.mxu0 0.0
    %615 = vmatpush.msra.mxu0 0.0
    %616 = vmatpush.msra.mxu0 0.0
    %617 = vmatpush.msra.mxu0 0.0
    %618 = vmatpush.msra.mxu0 0.0
    %619 = vmatpush.msra.mxu0 0.0
    %620 = vmatpush.msra.mxu0 0.0
    %621 = vmatpush.msra.mxu0 0.0
    %622 = vmatpush.msra.mxu0 0.0
    %623 = vmatpush.msra.mxu0 0.0
    %624 = vmatpush.msra.mxu0 0.0
    %625 = vmatpush.msra.mxu0 0.0
    %626 = vmatpush.msra.mxu0 %v606
    %627 = vmatmul.f32.gmra.mxu0 %v609
    %v628 = vpop.f32.mrf.mxu0
    %v629 = vadd.f32 0.0, %v628
    %630 = vdwg.mxu0
    %631 = vrot.lane.b32.xlu0 %v232, 104
    %v632 = vpop.permute.xlu0 %631
    %633 = vrot.lane.b32.xlu0 %v227, 72
    %v634 = vpop.permute.xlu0 %633
    %v635 = vsel %vm243, %v632, 0
    %v637 = vsel %vm243, %v634, 0
    %639 = vmatpush.xpose.msra.mxu0 0.0
    %640 = vmatpush.xpose.msra.mxu0 0.0
    %641 = vmatpush.xpose.msra.mxu0 0.0
    %642 = vmatpush.xpose.msra.mxu0 0.0
    %643 = vmatpush.xpose.msra.mxu0 0.0
    %644 = vmatpush.xpose.msra.mxu0 0.0
    %645 = vmatpush.xpose.msra.mxu0 0.0
    %646 = vmatpush.xpose.msra.mxu0 0.0
    %647 = vmatpush.xpose.msra.mxu0 0.0
    %648 = vmatpush.xpose.msra.mxu0 0.0
    %649 = vmatpush.xpose.msra.mxu0 0.0
    %650 = vmatpush.xpose.msra.mxu0 0.0
    %651 = vmatpush.xpose.msra.mxu0 0.0
    %652 = vmatpush.xpose.msra.mxu0 0.0
    %653 = vmatpush.xpose.msra.mxu0 0.0
    %654 = vmatpush.xpose.msra.mxu0 %v637
    %655 = vmatmul.f32.gmra.mxu0 %v635
    %v656 = vpop.f32.mrf.mxu0
    %v657 = vadd.f32 %v236, %v656
    %658 = vdwg.mxu0
    %659 = vrot.lane.b32.xlu0 %v233, 104
    %v660 = vpop.permute.xlu0 %659
    %661 = vrot.lane.b32.xlu0 %v230, 72
    %v662 = vpop.permute.xlu0 %661
    %v663 = vsel %vm243, %v660, 0
    %v665 = vsel %vm243, %v662, 0
    %667 = vmatpush.xpose.msra.mxu0 0.0
    %668 = vmatpush.xpose.msra.mxu0 0.0
    %669 = vmatpush.xpose.msra.mxu0 0.0
    %670 = vmatpush.xpose.msra.mxu0 0.0
    %671 = vmatpush.xpose.msra.mxu0 0.0
    %672 = vmatpush.xpose.msra.mxu0 0.0
    %673 = vmatpush.xpose.msra.mxu0 0.0
    %674 = vmatpush.xpose.msra.mxu0 0.0
    %675 = vmatpush.xpose.msra.mxu0 0.0
    %676 = vmatpush.xpose.msra.mxu0 0.0
    %677 = vmatpush.xpose.msra.mxu0 0.0
    %678 = vmatpush.xpose.msra.mxu0 0.0
    %679 = vmatpush.xpose.msra.mxu0 0.0
    %680 = vmatpush.xpose.msra.mxu0 0.0
    %681 = vmatpush.xpose.msra.mxu0 0.0
    %682 = vmatpush.xpose.msra.mxu0 %v665
    %683 = vmatmul.f32.gmra.mxu0 %v663
    %v684 = vpop.f32.mrf.mxu0
    %v685 = vadd.f32 %v237, %v684
    %686 = vdwg.mxu0
    %v687 = vsel %vm243, %v657, -inf
    %688 = vmax.xlane.f32.xlu0 %v687
    %v689 = vpop.xlane.xlu0 %688
    %v690 = vsel %vm243, %v685, -inf
    %691 = vmax.xlane.f32.xlu0 %v690
    %v692 = vpop.xlane.xlu0 %691
    %v693 = vsub.f32 %v657, %v689
    %v694 = vsub.f32 %v685, %v692
    %v695 = vmul.f32 %v693, 1.442695
    %v696 = vpow.pop %v695
    %v697 = vmul.f32 %v694, 1.442695
    %v698 = vpow.pop %v697
    %v699 = vsel %vm243, %v696, 0.0
    %700 = vadd.xlane.f32.xlu0 %v699
    %v701 = vpop.xlane.xlu0 %700
    %v702 = vsel %vm243, %v698, 0.0
    %703 = vadd.xlane.f32.xlu0 %v702
    %v704 = vpop.xlane.xlu0 %703
    %v705 = vrcp.pop %v701
    %v706 = vrcp.pop %v704
    %v707 = vmul.f32 %v696, %v705
    %v708 = vmul.f32 %v698, %v706
    %709 = vrot.lane.b32.xlu0 %v227, 40
    %v710 = vpop.permute.xlu0 %709
    %v713 = vsel %vm243, %v707, 0
    %715 = vmatpush.msra.mxu0 0.0
    %716 = vmatpush.msra.mxu0 0.0
    %717 = vmatpush.msra.mxu0 0.0
    %718 = vmatpush.msra.mxu0 0.0
    %719 = vmatpush.msra.mxu0 0.0
    %720 = vmatpush.msra.mxu0 0.0
    %721 = vmatpush.msra.mxu0 0.0
    %722 = vmatpush.msra.mxu0 0.0
    %723 = vmatpush.msra.mxu0 0.0
    %724 = vmatpush.msra.mxu0 0.0
    %725 = vmatpush.msra.mxu0 0.0
    %726 = vmatpush.msra.mxu0 0.0
    %727 = vmatpush.msra.mxu0 0.0
    %728 = vmatpush.msra.mxu0 0.0
    %729 = vmatpush.msra.mxu0 0.0
    %730 = vmatpush.msra.mxu0 %v710
    %731 = vmatmul.f32.gmra.mxu0 %v713
    %v732 = vpop.f32.mrf.mxu0
    %v733 = vadd.f32 0.0, %v732
    %734 = vdwg.mxu0
    %735 = vrot.lane.b32.xlu0 %v230, 40
    %v736 = vpop.permute.xlu0 %735
    %v739 = vsel %vm243, %v708, 0
    %741 = vmatpush.msra.mxu0 0.0
    %742 = vmatpush.msra.mxu0 0.0
    %743 = vmatpush.msra.mxu0 0.0
    %744 = vmatpush.msra.mxu0 0.0
    %745 = vmatpush.msra.mxu0 0.0
    %746 = vmatpush.msra.mxu0 0.0
    %747 = vmatpush.msra.mxu0 0.0
    %748 = vmatpush.msra.mxu0 0.0
    %749 = vmatpush.msra.mxu0 0.0
    %750 = vmatpush.msra.mxu0 0.0
    %751 = vmatpush.msra.mxu0 0.0
    %752 = vmatpush.msra.mxu0 0.0
    %753 = vmatpush.msra.mxu0 0.0
    %754 = vmatpush.msra.mxu0 0.0
    %755 = vmatpush.msra.mxu0 0.0
    %756 = vmatpush.msra.mxu0 %v736
    %757 = vmatmul.f32.gmra.mxu0 %v739
    %v758 = vpop.f32.mrf.mxu0
    %v759 = vadd.f32 0.0, %v758
    %760 = vdwg.mxu0
    %763 = vrot.lane.b32.xlu0 %v473, 8
    %v764 = vpop.permute.xlu0 %763
    %765 = vrot.lane.b32.xlu0 %v499, 8
    %v766 = vpop.permute.xlu0 %765
    %771 = vrot.lane.b32.xlu0 %v603, 16
    %v772 = vpop.permute.xlu0 %771
    %773 = vrot.lane.b32.xlu0 %v629, 16
    %v774 = vpop.permute.xlu0 %773
    %779 = vrot.lane.b32.xlu0 %v733, 24
    %v780 = vpop.permute.xlu0 %779
    %781 = vrot.lane.b32.xlu0 %v759, 24
    %v782 = vpop.permute.xlu0 %781
    %v785 = vsel %vm243, %v343, %v764
    %v786 = vsel %vm243, %v369, %v766
    %vm787 = vcmask 130048
    %v788 = vsel %vm787, %v785, %v772
    %v789 = vsel %vm787, %v786, %v774
    %vm790 = vcmask 195584
    %v791 = vsel %vm790, %v788, %v780
    %v792 = vsel %vm790, %v789, %v782
    %v793 = vld [vmem:[#allocation5] sm:$0xff]
    %v794 = vld [vmem:[#allocation5 + $0x8] sm:$0xff]
    %v795 = vld [vmem:[#allocation5 + $0x10] sm:$0xff]
    %v796 = vld [vmem:[#allocation5 + $0x18] sm:$0xff]
    %v797 = vld [vmem:[%s9] sm:$0x1]
    %v799 = vperm.slane %v797, 0
    %v802 = vsel %vm202, %v791, 0
    %v805 = vsel %vm202, %v792, 0
    %807 = vmatpush.msra.mxu0 0.0
    %808 = vmatpush.msra.mxu0 0.0
    %809 = vmatpush.msra.mxu0 0.0
    %810 = vmatpush.msra.mxu0 0.0
    %811 = vmatpush.msra.mxu0 0.0
    %812 = vmatpush.msra.mxu0 0.0
    %813 = vmatpush.msra.mxu0 0.0
    %814 = vmatpush.msra.mxu0 0.0
    %815 = vmatpush.msra.mxu0 0.0
    %816 = vmatpush.msra.mxu0 0.0
    %817 = vmatpush.msra.mxu0 0.0
    %818 = vmatpush.msra.mxu0 0.0
    %819 = vmatpush.msra.mxu0 %v796
    %820 = vmatpush.msra.mxu0 %v795
    %821 = vmatpush.msra.mxu0 %v794
    %822 = vmatpush.msra.mxu0 %v793
    %823 = vmatmul.f32.gmra.mxu0 %v802
    %v824 = vpop.f32.mrf.mxu0
    %v825 = vadd.f32 %v799, %v824
    %826 = vmatmul.f32.gmra.mxu0 %v805
    %v827 = vpop.f32.mrf.mxu0
    %v828 = vadd.f32 %v799, %v827
    %829 = vdwg.mxu0
    %v830 = vadd.f32 %v192, %v825
    %v831 = vadd.f32 %v193, %v828
    %v832 = vld [vmem:[%s10] sm:$0x1]
    %v834 = vperm.slane %v832, 0
    %v836 = vmul.f32 %v830, %v834
    %v837 = vmul.f32 %v831, %v834
    %v838 = vld [vmem:[%s11] sm:$0x1]
    %v840 = vperm.slane %v838, 0
    %v842 = vadd.f32 %v836, %v840
    %v843 = vadd.f32 %v837, %v840
    %v844 = vld [vmem:[#allocation7] sm:$0xff]
    %v845 = vld [vmem:[#allocation7 + $0x8] sm:$0xff]
    %v846 = vld [vmem:[#allocation7 + $0x10] sm:$0xff]
    %v847 = vld [vmem:[#allocation7 + $0x18] sm:$0xff]
    %v848 = vld [vmem:[%s13] sm:$0x1]
    %v850 = vperm.slane %v848, 0
    %v853 = vsel %vm202, %v842, 0
    %v856 = vsel %vm202, %v843, 0
    %858 = vmatpush.msra.mxu0 0.0
    %859 = vmatpush.msra.mxu0 0.0
    %860 = vmatpush.msra.mxu0 0.0
    %861 = vmatpush.msra.mxu0 0.0
    %862 = vmatpush.msra.mxu0 0.0
    %863 = vmatpush.msra.mxu0 0.0
    %864 = vmatpush.msra.mxu0 0.0
    %865 = vmatpush.msra.mxu0 0.0
    %866 = vmatpush.msra.mxu0 0.0
    %867 = vmatpush.msra.mxu0 0.0
    %868 = vmatpush.msra.mxu0 0.0
    %869 = vmatpush.msra.mxu0 0.0
    %870 = vmatpush.msra.mxu0 %v847
    %871 = vmatpush.msra.mxu0 %v846
    %872 = vmatpush.msra.mxu0 %v845
    %873 = vmatpush.msra.mxu0 %v844
    %874 = vmatmul.f32.gmra.mxu0 %v853
    %v875 = vpop.f32.mrf.mxu0
    %v876 = vadd.f32 %v850, %v875
    %877 = vmatmul.f32.gmra.mxu0 %v856
    %v878 = vpop.f32.mrf.mxu0
    %v879 = vadd.f32 %v850, %v878
    %880 = vdwg.mxu0
    %v881 = vmul.f32 %v876, 0.5
    %v882 = vmul.f32 %v879, 0.5
    %v883 = vmul.f32 %v876, 0.70710677
    %v884 = vmul.f32 %v879, 0.70710677
    %v885 = vmul.f32 %v883, %v883
    %v886 = vmin.f32 16.0, %v885
    %v887 = vmul.f32 %v886, 2.1237322e-06
    %v888 = vadd.f32 %v887, 0.00028619796
    %v889 = vmul.f32 %v886, %v888
    %v890 = vadd.f32 %v889, 0.0036580483
    %v891 = vmul.f32 %v886, %v890
    %v892 = vadd.f32 %v891, 0.05243302
    %v893 = vmul.f32 %v886, %v892
    %v894 = vadd.f32 %v893, 0.18741608
    %v895 = vmul.f32 %v886, %v894
    %v896 = vadd.f32 %v895, 1.1283791
    %v897 = vmul.f32 %v883, %v896
    %v898 = vmul.f32 %v886, 3.8918573e-05
    %v899 = vadd.f32 %v898, 0.001143296
    %v900 = vmul.f32 %v886, %v899
    %v901 = vadd.f32 %v900, 0.014752088
    %v902 = vmul.f32 %v886, %v901
    %v903 = vadd.f32 %v902, 0.112945676
    %v904 = vmul.f32 %v886, %v903
    %v905 = vadd.f32 %v904, 0.4994258
    %v906 = vmul.f32 %v886, %v905
    %v907 = vadd.f32 %v906, 1.0
    %v908 = vrcp.pop %v907
    %v909 = vmul.f32 %v907, %v908
    %v910 = vsub.f32 1.0, %v909
    %v911 = vmul.f32 %v908, %v910
    %v912 = vadd.f32 %v908, %v911
    %vm913 = vweird.f32 %v907
    %vm914 = vweird.f32 %v908
    %vm915 = vmor %vm913, %vm914
    %v916 = vsel %vm915, %v908, %v912
    %v917 = vand.u32 2147483647, %v907
    %vm918 = vcmp.eq.f32.partialorder %v917, 8.507059e+37
    %v919 = vand.u32 %v907, 2147483648
    %v920 = vor.u32 1.1754944e-38, %v919
    %v921 = vsel %vm918, %v920, %v916
    %v922 = vmul.f32 %v897, %v921
    %v923 = vmin.f32 %v922, 1.0
    %v924 = vmax.f32 %v923, -1.0
    %v925 = vmul.f32 %v884, %v884
    %v926 = vmin.f32 16.0, %v925
    %v927 = vmul.f32 %v926, 2.1237322e-06
    %v928 = vadd.f32 %v927, 0.00028619796
    %v929 = vmul.f32 %v926, %v928
    %v930 = vadd.f32 %v929, 0.0036580483
    %v931 = vmul.f32 %v926, %v930
    %v932 = vadd.f32 %v931, 0.05243302
    %v933 = vmul.f32 %v926, %v932
    %v934 = vadd.f32 %v933, 0.18741608
    %v935 = vmul.f32 %v926, %v934
    %v936 = vadd.f32 %v935, 1.1283791
    %v937 = vmul.f32 %v884, %v936
    %v938 = vmul.f32 %v926, 3.8918573e-05
    %v939 = vadd.f32 %v938, 0.001143296
    %v940 = vmul.f32 %v926, %v939
    %v941 = vadd.f32 %v940, 0.014752088
    %v942 = vmul.f32 %v926, %v941
    %v943 = vadd.f32 %v942, 0.112945676
    %v944 = vmul.f32 %v926, %v943
    %v945 = vadd.f32 %v944, 0.4994258
    %v946 = vmul.f32 %v926, %v945
    %v947 = vadd.f32 %v946, 1.0
    %v948 = vrcp.pop %v947
    %v949 = vmul.f32 %v947, %v948
    %v950 = vsub.f32 1.0, %v949
    %v951 = vmul.f32 %v948, %v950
    %v952 = vadd.f32 %v948, %v951
    %vm953 = vweird.f32 %v947
    %vm954 = vweird.f32 %v948
    %vm955 = vmor %vm953, %vm954
    %v956 = vsel %vm955, %v948, %v952
    %v957 = vand.u32 2147483647, %v947
    %vm958 = vcmp.eq.f32.partialorder %v957, 8.507059e+37
    %v959 = vand.u32 %v947, 2147483648
    %v960 = vor.u32 1.1754944e-38, %v959
    %v961 = vsel %vm958, %v960, %v956
    %v962 = vmul.f32 %v937, %v961
    %v963 = vmin.f32 %v962, 1.0
    %v964 = vmax.f32 %v963, -1.0
    %v965 = vadd.f32 %v924, 1.0
    %v966 = vadd.f32 %v964, 1.0
    %v967 = vmul.f32 %v881, %v965
    %v968 = vmul.f32 %v882, %v966
    %v969 = vld [vmem:[#allocation8] sm:$0xff]
    %v970 = vld [vmem:[#allocation8 + $0x8] sm:$0xff]
    %v971 = vld [vmem:[#allocation8 + $0x10] sm:$0xff]
    %v972 = vld [vmem:[#allocation8 + $0x18] sm:$0xff]
    %v973 = vld [vmem:[#allocation8 + $0x20] sm:$0xff]
    %v974 = vld [vmem:[#allocation8 + $0x28] sm:$0xff]
    %v975 = vld [vmem:[#allocation8 + $0x30] sm:$0xff]
    %v976 = vld [vmem:[#allocation8 + $0x38] sm:$0xff]
    %v977 = vld [vmem:[%s15] sm:$0x1]
    %v979 = vperm.slane %v977, 0
    %vm981 = vcmask 523264
    %v983 = vsel %vm981, %v967, 0
    %v986 = vsel %vm981, %v968, 0
    %988 = vmatpush.msra.mxu0 0.0
    %989 = vmatpush.msra.mxu0 0.0
    %990 = vmatpush.msra.mxu0 0.0
    %991 = vmatpush.msra.mxu0 0.0
    %992 = vmatpush.msra.mxu0 0.0
    %993 = vmatpush.msra.mxu0 0.0
    %994 = vmatpush.msra.mxu0 0.0
    %995 = vmatpush.msra.mxu0 0.0
    %996 = vmatpush.msra.mxu0 %v976
    %997 = vmatpush.msra.mxu0 %v975
    %998 = vmatpush.msra.mxu0 %v974
    %999 = vmatpush.msra.mxu0 %v973
    %1000 = vmatpush.msra.mxu0 %v972
    %1001 = vmatpush.msra.mxu0 %v971
    %1002 = vmatpush.msra.mxu0 %v970
    %1003 = vmatpush.msra.mxu0 %v969
    %1004 = vmatmul.f32.gmra.mxu0 %v983
    %v1005 = vpop.f32.mrf.mxu0
    %v1006 = vadd.f32 %v979, %v1005
    %1007 = vmatmul.f32.gmra.mxu0 %v986
    %v1008 = vpop.f32.mrf.mxu0
    %v1009 = vadd.f32 %v979, %v1008
    %1010 = vdwg.mxu0
    %v1011 = vadd.f32 %v842, %v1006
    %v1012 = vadd.f32 %v843, %v1009
    %v1013 = vld [vmem:[%s16] sm:$0x1]
    %v1015 = vperm.slane %v1013, 0
    %v1017 = vmul.f32 %v1011, %v1015
    %v1018 = vmul.f32 %v1012, %v1015
    %v1019 = vld [vmem:[%s17] sm:$0x1]
    %v1021 = vperm.slane %v1019, 0
    %v1023 = vadd.f32 %v1017, %v1021
    %v1024 = vadd.f32 %v1018, %v1021
    %s1025 = scalar_lea.vmem [#allocation2], 32
    %v1026 = vld [vmem:[%s1025] sm:$0xff]
    %v1027 = vld [vmem:[%s1025 + $0x8] sm:$0xff]
    %v1028 = vld [vmem:[%s1025 + $0x10] sm:$0xff]
    %v1029 = vld [vmem:[%s1025 + $0x18] sm:$0xff]
    %s1030 = scalar_lea.vmem %s7, 1
    %v1031 = vld [vmem:[%s1030] sm:$0x1]
    %v1033 = vperm.slane %v1031, 0
    %v1036 = vsel %vm202, %v1023, 0
    %v1039 = vsel %vm202, %v1024, 0
    %1041 = vmatpush.msra.mxu0 0.0
    %1042 = vmatpush.msra.mxu0 0.0
    %1043 = vmatpush.msra.mxu0 0.0
    %1044 = vmatpush.msra.mxu0 0.0
    %1045 = vmatpush.msra.mxu0 0.0
    %1046 = vmatpush.msra.mxu0 0.0
    %1047 = vmatpush.msra.mxu0 0.0
    %1048 = vmatpush.msra.mxu0 0.0
    %1049 = vmatpush.msra.mxu0 0.0
    %1050 = vmatpush.msra.mxu0 0.0
    %1051 = vmatpush.msra.mxu0 0.0
    %1052 = vmatpush.msra.mxu0 0.0
    %1053 = vmatpush.msra.mxu0 %v1029
    %1054 = vmatpush.msra.mxu0 %v1028
    %1055 = vmatpush.msra.mxu0 %v1027
    %1056 = vmatpush.msra.mxu0 %v1026
    %1057 = vmatmul.f32.gmra.mxu0 %v1036
    %v1058 = vpop.f32.mrf.mxu0
    %v1059 = vadd.f32 %v1033, %v1058
    %1060 = vmatmul.f32.gmra.mxu0 %v1039
    %v1061 = vpop.f32.mrf.mxu0
    %v1062 = vadd.f32 %v1033, %v1061
    %1063 = vdwg.mxu0
    %v1064 = vmul.f32 %v1059, 0.35355338
    %v1065 = vmul.f32 %v1062, 0.35355338
    %1067 = vrot.lane.b32.xlu0 %v1059, 96
    %v1068 = vpop.permute.xlu0 %1067
    %v1070 = vsel %vm243, %v1064, 0
    %v1072 = vsel %vm243, %v1068, 0
    %1074 = vmatpush.xpose.msra.mxu0 0.0
    %1075 = vmatpush.xpose.msra.mxu0 0.0
    %1076 = vmatpush.xpose.msra.mxu0 0.0
    %1077 = vmatpush.xpose.msra.mxu0 0.0
    %1078 = vmatpush.xpose.msra.mxu0 0.0
    %1079 = vmatpush.xpose.msra.mxu0 0.0
    %1080 = vmatpush.xpose.msra.mxu0 0.0
    %1081 = vmatpush.xpose.msra.mxu0 0.0
    %1082 = vmatpush.xpose.msra.mxu0 0.0
    %1083 = vmatpush.xpose.msra.mxu0 0.0
    %1084 = vmatpush.xpose.msra.mxu0 0.0
    %1085 = vmatpush.xpose.msra.mxu0 0.0
    %1086 = vmatpush.xpose.msra.mxu0 0.0
    %1087 = vmatpush.xpose.msra.mxu0 0.0
    %1088 = vmatpush.xpose.msra.mxu0 0.0
    %1089 = vmatpush.xpose.msra.mxu0 %v1072
    %1090 = vmatmul.f32.gmra.mxu0 %v1070
    %v1091 = vpop.f32.mrf.mxu0
    %v1092 = vadd.f32 %v236, %v1091
    %1093 = vdwg.mxu0
    %1095 = vrot.lane.b32.xlu0 %v1062, 96
    %v1096 = vpop.permute.xlu0 %1095
    %v1098 = vsel %vm243, %v1065, 0
    %v1100 = vsel %vm243, %v1096, 0
    %1102 = vmatpush.xpose.msra.mxu0 0.0
    %1103 = vmatpush.xpose.msra.mxu0 0.0
    %1104 = vmatpush.xpose.msra.mxu0 0.0
    %1105 = vmatpush.xpose.msra.mxu0 0.0
    %1106 = vmatpush.xpose.msra.mxu0 0.0
    %1107 = vmatpush.xpose.msra.mxu0 0.0
    %1108 = vmatpush.xpose.msra.mxu0 0.0
    %1109 = vmatpush.xpose.msra.mxu0 0.0
    %1110 = vmatpush.xpose.msra.mxu0 0.0
    %1111 = vmatpush.xpose.msra.mxu0 0.0
    %1112 = vmatpush.xpose.msra.mxu0 0.0
    %1113 = vmatpush.xpose.msra.mxu0 0.0
    %1114 = vmatpush.xpose.msra.mxu0 0.0
    %1115 = vmatpush.xpose.msra.mxu0 0.0
    %1116 = vmatpush.xpose.msra.mxu0 0.0
    %1117 = vmatpush.xpose.msra.mxu0 %v1100
    %1118 = vmatmul.f32.gmra.mxu0 %v1098
    %v1119 = vpop.f32.mrf.mxu0
    %v1120 = vadd.f32 %v237, %v1119
    %1121 = vdwg.mxu0
    %v1122 = vsel %vm243, %v1092, -inf
    %1123 = vmax.xlane.f32.xlu0 %v1122
    %v1124 = vpop.xlane.xlu0 %1123
    %v1125 = vsel %vm243, %v1120, -inf
    %1126 = vmax.xlane.f32.xlu0 %v1125
    %v1127 = vpop.xlane.xlu0 %1126
    %v1128 = vsub.f32 %v1092, %v1124
    %v1129 = vsub.f32 %v1120, %v1127
    %v1130 = vmul.f32 %v1128, 1.442695
    %v1131 = vpow.pop %v1130
    %v1132 = vmul.f32 %v1129, 1.442695
    %v1133 = vpow.pop %v1132
    %v1134 = vsel %vm243, %v1131, 0.0
    %1135 = vadd.xlane.f32.xlu0 %v1134
    %v1136 = vpop.xlane.xlu0 %1135
    %v1137 = vsel %vm243, %v1133, 0.0
    %1138 = vadd.xlane.f32.xlu0 %v1137
    %v1139 = vpop.xlane.xlu0 %1138
    %v1140 = vrcp.pop %v1136
    %v1141 = vrcp.pop %v1139
    %v1142 = vmul.f32 %v1131, %v1140
    %v1143 = vmul.f32 %v1133, %v1141
    %1144 = vrot.lane.b32.xlu0 %v1059, 64
    %v1145 = vpop.permute.xlu0 %1144
    %v1148 = vsel %vm243, %v1142, 0
    %1150 = vmatpush.msra.mxu0 0.0
    %1151 = vmatpush.msra.mxu0 0.0
    %1152 = vmatpush.msra.mxu0 0.0
    %1153 = vmatpush.msra.mxu0 0.0
    %1154 = vmatpush.msra.mxu0 0.0
    %1155 = vmatpush.msra.mxu0 0.0
    %1156 = vmatpush.msra.mxu0 0.0
    %1157 = vmatpush.msra.mxu0 0.0
    %1158 = vmatpush.msra.mxu0 0.0
    %1159 = vmatpush.msra.mxu0 0.0
    %1160 = vmatpush.msra.mxu0 0.0
    %1161 = vmatpush.msra.mxu0 0.0
    %1162 = vmatpush.msra.mxu0 0.0
    %1163 = vmatpush.msra.mxu0 0.0
    %1164 = vmatpush.msra.mxu0 0.0
    %1165 = vmatpush.msra.mxu0 %v1145
    %1166 = vmatmul.f32.gmra.mxu0 %v1148
    %v1167 = vpop.f32.mrf.mxu0
    %v1168 = vadd.f32 0.0, %v1167
    %1169 = vdwg.mxu0
    %1170 = vrot.lane.b32.xlu0 %v1062, 64
    %v1171 = vpop.permute.xlu0 %1170
    %v1174 = vsel %vm243, %v1143, 0
    %1176 = vmatpush.msra.mxu0 0.0
    %1177 = vmatpush.msra.mxu0 0.0
    %1178 = vmatpush.msra.mxu0 0.0
    %1179 = vmatpush.msra.mxu0 0.0
    %1180 = vmatpush.msra.mxu0 0.0
    %1181 = vmatpush.msra.mxu0 0.0
    %1182 = vmatpush.msra.mxu0 0.0
    %1183 = vmatpush.msra.mxu0 0.0
    %1184 = vmatpush.msra.mxu0 0.0
    %1185 = vmatpush.msra.mxu0 0.0
    %1186 = vmatpush.msra.mxu0 0.0
    %1187 = vmatpush.msra.mxu0 0.0
    %1188 = vmatpush.msra.mxu0 0.0
    %1189 = vmatpush.msra.mxu0 0.0
    %1190 = vmatpush.msra.mxu0 0.0
    %1191 = vmatpush.msra.mxu0 %v1171
    %1192 = vmatmul.f32.gmra.mxu0 %v1174
    %v1193 = vpop.f32.mrf.mxu0
    %v1194 = vadd.f32 0.0, %v1193
    %1195 = vdwg.mxu0
    %1196 = vrot.lane.b32.xlu0 %v1064, 120
    %v1197 = vpop.permute.xlu0 %1196
    %1198 = vrot.lane.b32.xlu0 %v1059, 88
    %v1199 = vpop.permute.xlu0 %1198
    %v1200 = vsel %vm243, %v1197, 0
    %v1202 = vsel %vm243, %v1199, 0
    %1204 = vmatpush.xpose.msra.mxu0 0.0
    %1205 = vmatpush.xpose.msra.mxu0 0.0
    %1206 = vmatpush.xpose.msra.mxu0 0.0
    %1207 = vmatpush.xpose.msra.mxu0 0.0
    %1208 = vmatpush.xpose.msra.mxu0 0.0
    %1209 = vmatpush.xpose.msra.mxu0 0.0
    %1210 = vmatpush.xpose.msra.mxu0 0.0
    %1211 = vmatpush.xpose.msra.mxu0 0.0
    %1212 = vmatpush.xpose.msra.mxu0 0.0
    %1213 = vmatpush.xpose.msra.mxu0 0.0
    %1214 = vmatpush.xpose.msra.mxu0 0.0
    %1215 = vmatpush.xpose.msra.mxu0 0.0
    %1216 = vmatpush.xpose.msra.mxu0 0.0
    %1217 = vmatpush.xpose.msra.mxu0 0.0
    %1218 = vmatpush.xpose.msra.mxu0 0.0
    %1219 = vmatpush.xpose.msra.mxu0 %v1202
    %1220 = vmatmul.f32.gmra.mxu0 %v1200
    %v1221 = vpop.f32.mrf.mxu0
    %v1222 = vadd.f32 %v236, %v1221
    %1223 = vdwg.mxu0
    %1224 = vrot.lane.b32.xlu0 %v1065, 120
    %v1225 = vpop.permute.xlu0 %1224
    %1226 = vrot.lane.b32.xlu0 %v1062, 88
    %v1227 = vpop.permute.xlu0 %1226
    %v1228 = vsel %vm243, %v1225, 0
    %v1230 = vsel %vm243, %v1227, 0
    %1232 = vmatpush.xpose.msra.mxu0 0.0
    %1233 = vmatpush.xpose.msra.mxu0 0.0
    %1234 = vmatpush.xpose.msra.mxu0 0.0
    %1235 = vmatpush.xpose.msra.mxu0 0.0
    %1236 = vmatpush.xpose.msra.mxu0 0.0
    %1237 = vmatpush.xpose.msra.mxu0 0.0
    %1238 = vmatpush.xpose.msra.mxu0 0.0
    %1239 = vmatpush.xpose.msra.mxu0 0.0
    %1240 = vmatpush.xpose.msra.mxu0 0.0
    %1241 = vmatpush.xpose.msra.mxu0 0.0
    %1242 = vmatpush.xpose.msra.mxu0 0.0
    %1243 = vmatpush.xpose.msra.mxu0 0.0
    %1244 = vmatpush.xpose.msra.mxu0 0.0
    %1245 = vmatpush.xpose.msra.mxu0 0.0
    %1246 = vmatpush.xpose.msra.mxu0 0.0
    %1247 = vmatpush.xpose.msra.mxu0 %v1230
    %1248 = vmatmul.f32.gmra.mxu0 %v1228
    %v1249 = vpop.f32.mrf.mxu0
    %v1250 = vadd.f32 %v237, %v1249
    %1251 = vdwg.mxu0
    %v1252 = vsel %vm243, %v1222, -inf
    %1253 = vmax.xlane.f32.xlu0 %v1252
    %v1254 = vpop.xlane.xlu0 %1253
    %v1255 = vsel %vm243, %v1250, -inf
    %1256 = vmax.xlane.f32.xlu0 %v1255
    %v1257 = vpop.xlane.xlu0 %1256
    %v1258 = vsub.f32 %v1222, %v1254
    %v1259 = vsub.f32 %v1250, %v1257
    %v1260 = vmul.f32 %v1258, 1.442695
    %v1261 = vpow.pop %v1260
    %v1262 = vmul.f32 %v1259, 1.442695
    %v1263 = vpow.pop %v1262
    %v1264 = vsel %vm243, %v1261, 0.0
    %1265 = vadd.xlane.f32.xlu0 %v1264
    %v1266 = vpop.xlane.xlu0 %1265
    %v1267 = vsel %vm243, %v1263, 0.0
    %1268 = vadd.xlane.f32.xlu0 %v1267
    %v1269 = vpop.xlane.xlu0 %1268
    %v1270 = vrcp.pop %v1266
    %v1271 = vrcp.pop %v1269
    %v1272 = vmul.f32 %v1261, %v1270
    %v1273 = vmul.f32 %v1263, %v1271
    %1274 = vrot.lane.b32.xlu0 %v1059, 56
    %v1275 = vpop.permute.xlu0 %1274
    %v1278 = vsel %vm243, %v1272, 0
    %1280 = vmatpush.msra.mxu0 0.0
    %1281 = vmatpush.msra.mxu0 0.0
    %1282 = vmatpush.msra.mxu0 0.0
    %1283 = vmatpush.msra.mxu0 0.0
    %1284 = vmatpush.msra.mxu0 0.0
    %1285 = vmatpush.msra.mxu0 0.0
    %1286 = vmatpush.msra.mxu0 0.0
    %1287 = vmatpush.msra.mxu0 0.0
    %1288 = vmatpush.msra.mxu0 0.0
    %1289 = vmatpush.msra.mxu0 0.0
    %1290 = vmatpush.msra.mxu0 0.0
    %1291 = vmatpush.msra.mxu0 0.0
    %1292 = vmatpush.msra.mxu0 0.0
    %1293 = vmatpush.msra.mxu0 0.0
    %1294 = vmatpush.msra.mxu0 0.0
    %1295 = vmatpush.msra.mxu0 %v1275
    %1296 = vmatmul.f32.gmra.mxu0 %v1278
    %v1297 = vpop.f32.mrf.mxu0
    %v1298 = vadd.f32 0.0, %v1297
    %1299 = vdwg.mxu0
    %1300 = vrot.lane.b32.xlu0 %v1062, 56
    %v1301 = vpop.permute.xlu0 %1300
    %v1304 = vsel %vm243, %v1273, 0
    %1306 = vmatpush.msra.mxu0 0.0
    %1307 = vmatpush.msra.mxu0 0.0
    %1308 = vmatpush.msra.mxu0 0.0
    %1309 = vmatpush.msra.mxu0 0.0
    %1310 = vmatpush.msra.mxu0 0.0
    %1311 = vmatpush.msra.mxu0 0.0
    %1312 = vmatpush.msra.mxu0 0.0
    %1313 = vmatpush.msra.mxu0 0.0
    %1314 = vmatpush.msra.mxu0 0.0
    %1315 = vmatpush.msra.mxu0 0.0
    %1316 = vmatpush.msra.mxu0 0.0
    %1317 = vmatpush.msra.mxu0 0.0
    %1318 = vmatpush.msra.mxu0 0.0
    %1319 = vmatpush.msra.mxu0 0.0
    %1320 = vmatpush.msra.mxu0 0.0
    %1321 = vmatpush.msra.mxu0 %v1301
    %1322 = vmatmul.f32.gmra.mxu0 %v1304
    %v1323 = vpop.f32.mrf.mxu0
    %v1324 = vadd.f32 0.0, %v1323
    %1325 = vdwg.mxu0
    %1326 = vrot.lane.b32.xlu0 %v1064, 112
    %v1327 = vpop.permute.xlu0 %1326
    %1328 = vrot.lane.b32.xlu0 %v1059, 80
    %v1329 = vpop.permute.xlu0 %1328
    %v1330 = vsel %vm243, %v1327, 0
    %v1332 = vsel %vm243, %v1329, 0
    %1334 = vmatpush.xpose.msra.mxu0 0.0
    %1335 = vmatpush.xpose.msra.mxu0 0.0
    %1336 = vmatpush.xpose.msra.mxu0 0.0
    %1337 = vmatpush.xpose.msra.mxu0 0.0
    %1338 = vmatpush.xpose.msra.mxu0 0.0
    %1339 = vmatpush.xpose.msra.mxu0 0.0
    %1340 = vmatpush.xpose.msra.mxu0 0.0
    %1341 = vmatpush.xpose.msra.mxu0 0.0
    %1342 = vmatpush.xpose.msra.mxu0 0.0
    %1343 = vmatpush.xpose.msra.mxu0 0.0
    %1344 = vmatpush.xpose.msra.mxu0 0.0
    %1345 = vmatpush.xpose.msra.mxu0 0.0
    %1346 = vmatpush.xpose.msra.mxu0 0.0
    %1347 = vmatpush.xpose.msra.mxu0 0.0
    %1348 = vmatpush.xpose.msra.mxu0 0.0
    %1349 = vmatpush.xpose.msra.mxu0 %v1332
    %1350 = vmatmul.f32.gmra.mxu0 %v1330
    %v1351 = vpop.f32.mrf.mxu0
    %v1352 = vadd.f32 %v236, %v1351
    %1353 = vdwg.mxu0
    %1354 = vrot.lane.b32.xlu0 %v1065, 112
    %v1355 = vpop.permute.xlu0 %1354
    %1356 = vrot.lane.b32.xlu0 %v1062, 80
    %v1357 = vpop.permute.xlu0 %1356
    %v1358 = vsel %vm243, %v1355, 0
    %v1360 = vsel %vm243, %v1357, 0
    %1362 = vmatpush.xpose.msra.mxu0 0.0
    %1363 = vmatpush.xpose.msra.mxu0 0.0
    %1364 = vmatpush.xpose.msra.mxu0 0.0
    %1365 = vmatpush.xpose.msra.mxu0 0.0
    %1366 = vmatpush.xpose.msra.mxu0 0.0
    %1367 = vmatpush.xpose.msra.mxu0 0.0
    %1368 = vmatpush.xpose.msra.mxu0 0.0
    %1369 = vmatpush.xpose.msra.mxu0 0.0
    %1370 = vmatpush.xpose.msra.mxu0 0.0
    %1371 = vmatpush.xpose.msra.mxu0 0.0
    %1372 = vmatpush.xpose.msra.mxu0 0.0
    %1373 = vmatpush.xpose.msra.mxu0 0.0
    %1374 = vmatpush.xpose.msra.mxu0 0.0
    %1375 = vmatpush.xpose.msra.mxu0 0.0
    %1376 = vmatpush.xpose.msra.mxu0 0.0
    %1377 = vmatpush.xpose.msra.mxu0 %v1360
    %1378 = vmatmul.f32.gmra.mxu0 %v1358
    %v1379 = vpop.f32.mrf.mxu0
    %v1380 = vadd.f32 %v237, %v1379
    %1381 = vdwg.mxu0
    %v1382 = vsel %vm243, %v1352, -inf
    %1383 = vmax.xlane.f32.xlu0 %v1382
    %v1384 = vpop.xlane.xlu0 %1383
    %v1385 = vsel %vm243, %v1380, -inf
    %1386 = vmax.xlane.f32.xlu0 %v1385
    %v1387 = vpop.xlane.xlu0 %1386
    %v1388 = vsub.f32 %v1352, %v1384
    %v1389 = vsub.f32 %v1380, %v1387
    %v1390 = vmul.f32 %v1388, 1.442695
    %v1391 = vpow.pop %v1390
    %v1392 = vmul.f32 %v1389, 1.442695
    %v1393 = vpow.pop %v1392
    %v1394 = vsel %vm243, %v1391, 0.0
    %1395 = vadd.xlane.f32.xlu0 %v1394
    %v1396 = vpop.xlane.xlu0 %1395
    %v1397 = vsel %vm243, %v1393, 0.0
    %1398 = vadd.xlane.f32.xlu0 %v1397
    %v1399 = vpop.xlane.xlu0 %1398
    %v1400 = vrcp.pop %v1396
    %v1401 = vrcp.pop %v1399
    %v1402 = vmul.f32 %v1391, %v1400
    %v1403 = vmul.f32 %v1393, %v1401
    %1404 = vrot.lane.b32.xlu0 %v1059, 48
    %v1405 = vpop.permute.xlu0 %1404
    %v1408 = vsel %vm243, %v1402, 0
    %1410 = vmatpush.msra.mxu0 0.0
    %1411 = vmatpush.msra.mxu0 0.0
    %1412 = vmatpush.msra.mxu0 0.0
    %1413 = vmatpush.msra.mxu0 0.0
    %1414 = vmatpush.msra.mxu0 0.0
    %1415 = vmatpush.msra.mxu0 0.0
    %1416 = vmatpush.msra.mxu0 0.0
    %1417 = vmatpush.msra.mxu0 0.0
    %1418 = vmatpush.msra.mxu0 0.0
    %1419 = vmatpush.msra.mxu0 0.0
    %1420 = vmatpush.msra.mxu0 0.0
    %1421 = vmatpush.msra.mxu0 0.0
    %1422 = vmatpush.msra.mxu0 0.0
    %1423 = vmatpush.msra.mxu0 0.0
    %1424 = vmatpush.msra.mxu0 0.0
    %1425 = vmatpush.msra.mxu0 %v1405
    %1426 = vmatmul.f32.gmra.mxu0 %v1408
    %v1427 = vpop.f32.mrf.mxu0
    %v1428 = vadd.f32 0.0, %v1427
    %1429 = vdwg.mxu0
    %1430 = vrot.lane.b32.xlu0 %v1062, 48
    %v1431 = vpop.permute.xlu0 %1430
    %v1434 = vsel %vm243, %v1403, 0
    %1436 = vmatpush.msra.mxu0 0.0
    %1437 = vmatpush.msra.mxu0 0.0
    %1438 = vmatpush.msra.mxu0 0.0
    %1439 = vmatpush.msra.mxu0 0.0
    %1440 = vmatpush.msra.mxu0 0.0
    %1441 = vmatpush.msra.mxu0 0.0
    %1442 = vmatpush.msra.mxu0 0.0
    %1443 = vmatpush.msra.mxu0 0.0
    %1444 = vmatpush.msra.mxu0 0.0
    %1445 = vmatpush.msra.mxu0 0.0
    %1446 = vmatpush.msra.mxu0 0.0
    %1447 = vmatpush.msra.mxu0 0.0
    %1448 = vmatpush.msra.mxu0 0.0
    %1449 = vmatpush.msra.mxu0 0.0
    %1450 = vmatpush.msra.mxu0 0.0
    %1451 = vmatpush.msra.mxu0 %v1431
    %1452 = vmatmul.f32.gmra.mxu0 %v1434
    %v1453 = vpop.f32.mrf.mxu0
    %v1454 = vadd.f32 0.0, %v1453
    %1455 = vdwg.mxu0
    %1456 = vrot.lane.b32.xlu0 %v1064, 104
    %v1457 = vpop.permute.xlu0 %1456
    %1458 = vrot.lane.b32.xlu0 %v1059, 72
    %v1459 = vpop.permute.xlu0 %1458
    %v1460 = vsel %vm243, %v1457, 0
    %v1462 = vsel %vm243, %v1459, 0
    %1464 = vmatpush.xpose.msra.mxu0 0.0
    %1465 = vmatpush.xpose.msra.mxu0 0.0
    %1466 = vmatpush.xpose.msra.mxu0 0.0
    %1467 = vmatpush.xpose.msra.mxu0 0.0
    %1468 = vmatpush.xpose.msra.mxu0 0.0
    %1469 = vmatpush.xpose.msra.mxu0 0.0
    %1470 = vmatpush.xpose.msra.mxu0 0.0
    %1471 = vmatpush.xpose.msra.mxu0 0.0
    %1472 = vmatpush.xpose.msra.mxu0 0.0
    %1473 = vmatpush.xpose.msra.mxu0 0.0
    %1474 = vmatpush.xpose.msra.mxu0 0.0
    %1475 = vmatpush.xpose.msra.mxu0 0.0
    %1476 = vmatpush.xpose.msra.mxu0 0.0
    %1477 = vmatpush.xpose.msra.mxu0 0.0
    %1478 = vmatpush.xpose.msra.mxu0 0.0
    %1479 = vmatpush.xpose.msra.mxu0 %v1462
    %1480 = vmatmul.f32.gmra.mxu0 %v1460
    %v1481 = vpop.f32.mrf.mxu0
    %v1482 = vadd.f32 %v236, %v1481
    %1483 = vdwg.mxu0
    %1484 = vrot.lane.b32.xlu0 %v1065, 104
    %v1485 = vpop.permute.xlu0 %1484
    %1486 = vrot.lane.b32.xlu0 %v1062, 72
    %v1487 = vpop.permute.xlu0 %1486
    %v1488 = vsel %vm243, %v1485, 0
    %v1490 = vsel %vm243, %v1487, 0
    %1492 = vmatpush.xpose.msra.mxu0 0.0
    %1493 = vmatpush.xpose.msra.mxu0 0.0
    %1494 = vmatpush.xpose.msra.mxu0 0.0
    %1495 = vmatpush.xpose.msra.mxu0 0.0
    %1496 = vmatpush.xpose.msra.mxu0 0.0
    %1497 = vmatpush.xpose.msra.mxu0 0.0
    %1498 = vmatpush.xpose.msra.mxu0 0.0
    %1499 = vmatpush.xpose.msra.mxu0 0.0
    %1500 = vmatpush.xpose.msra.mxu0 0.0
    %1501 = vmatpush.xpose.msra.mxu0 0.0
    %1502 = vmatpush.xpose.msra.mxu0 0.0
    %1503 = vmatpush.xpose.msra.mxu0 0.0
    %1504 = vmatpush.xpose.msra.mxu0 0.0
    %1505 = vmatpush.xpose.msra.mxu0 0.0
    %1506 = vmatpush.xpose.msra.mxu0 0.0
    %1507 = vmatpush.xpose.msra.mxu0 %v1490
    %1508 = vmatmul.f32.gmra.mxu0 %v1488
    %v1509 = vpop.f32.mrf.mxu0
    %v1510 = vadd.f32 %v237, %v1509
    %1511 = vdwg.mxu0
    %v1512 = vsel %vm243, %v1482, -inf
    %1513 = vmax.xlane.f32.xlu0 %v1512
    %v1514 = vpop.xlane.xlu0 %1513
    %v1515 = vsel %vm243, %v1510, -inf
    %1516 = vmax.xlane.f32.xlu0 %v1515
    %v1517 = vpop.xlane.xlu0 %1516
    %v1518 = vsub.f32 %v1482, %v1514
    %v1519 = vsub.f32 %v1510, %v1517
    %v1520 = vmul.f32 %v1518, 1.442695
    %v1521 = vpow.pop %v1520
    %v1522 = vmul.f32 %v1519, 1.442695
    %v1523 = vpow.pop %v1522
    %v1524 = vsel %vm243, %v1521, 0.0
    %1525 = vadd.xlane.f32.xlu0 %v1524
    %v1526 = vpop.xlane.xlu0 %1525
    %v1527 = vsel %vm243, %v1523, 0.0
    %1528 = vadd.xlane.f32.xlu0 %v1527
    %v1529 = vpop.xlane.xlu0 %1528
    %v1530 = vrcp.pop %v1526
    %v1531 = vrcp.pop %v1529
    %v1532 = vmul.f32 %v1521, %v1530
    %v1533 = vmul.f32 %v1523, %v1531
    %1534 = vrot.lane.b32.xlu0 %v1059, 40
    %v1535 = vpop.permute.xlu0 %1534
    %v1538 = vsel %vm243, %v1532, 0
    %1540 = vmatpush.msra.mxu0 0.0
    %1541 = vmatpush.msra.mxu0 0.0
    %1542 = vmatpush.msra.mxu0 0.0
    %1543 = vmatpush.msra.mxu0 0.0
    %1544 = vmatpush.msra.mxu0 0.0
    %1545 = vmatpush.msra.mxu0 0.0
    %1546 = vmatpush.msra.mxu0 0.0
    %1547 = vmatpush.msra.mxu0 0.0
    %1548 = vmatpush.msra.mxu0 0.0
    %1549 = vmatpush.msra.mxu0 0.0
    %1550 = vmatpush.msra.mxu0 0.0
    %1551 = vmatpush.msra.mxu0 0.0
    %1552 = vmatpush.msra.mxu0 0.0
    %1553 = vmatpush.msra.mxu0 0.0
    %1554 = vmatpush.msra.mxu0 0.0
    %1555 = vmatpush.msra.mxu0 %v1535
    %1556 = vmatmul.f32.gmra.mxu0 %v1538
    %v1557 = vpop.f32.mrf.mxu0
    %v1558 = vadd.f32 0.0, %v1557
    %1559 = vdwg.mxu0
    %1560 = vrot.lane.b32.xlu0 %v1062, 40
    %v1561 = vpop.permute.xlu0 %1560
    %v1564 = vsel %vm243, %v1533, 0
    %1566 = vmatpush.msra.mxu0 0.0
    %1567 = vmatpush.msra.mxu0 0.0
    %1568 = vmatpush.msra.mxu0 0.0
    %1569 = vmatpush.msra.mxu0 0.0
    %1570 = vmatpush.msra.mxu0 0.0
    %1571 = vmatpush.msra.mxu0 0.0
    %1572 = vmatpush.msra.mxu0 0.0
    %1573 = vmatpush.msra.mxu0 0.0
    %1574 = vmatpush.msra.mxu0 0.0
    %1575 = vmatpush.msra.mxu0 0.0
    %1576 = vmatpush.msra.mxu0 0.0
    %1577 = vmatpush.msra.mxu0 0.0
    %1578 = vmatpush.msra.mxu0 0.0
    %1579 = vmatpush.msra.mxu0 0.0
    %1580 = vmatpush.msra.mxu0 0.0
    %1581 = vmatpush.msra.mxu0 %v1561
    %1582 = vmatmul.f32.gmra.mxu0 %v1564
    %v1583 = vpop.f32.mrf.mxu0
    %v1584 = vadd.f32 0.0, %v1583
    %1585 = vdwg.mxu0
    %1588 = vrot.lane.b32.xlu0 %v1298, 8
    %v1589 = vpop.permute.xlu0 %1588
    %1590 = vrot.lane.b32.xlu0 %v1324, 8
    %v1591 = vpop.permute.xlu0 %1590
    %1596 = vrot.lane.b32.xlu0 %v1428, 16
    %v1597 = vpop.permute.xlu0 %1596
    %1598 = vrot.lane.b32.xlu0 %v1454, 16
    %v1599 = vpop.permute.xlu0 %1598
    %1604 = vrot.lane.b32.xlu0 %v1558, 24
    %v1605 = vpop.permute.xlu0 %1604
    %1606 = vrot.lane.b32.xlu0 %v1584, 24
    %v1607 = vpop.permute.xlu0 %1606
    %v1610 = vsel %vm243, %v1168, %v1589
    %v1611 = vsel %vm243, %v1194, %v1591
    %v1612 = vsel %vm787, %v1610, %v1597
    %v1613 = vsel %vm787, %v1611, %v1599
    %v1614 = vsel %vm790, %v1612, %v1605
    %v1615 = vsel %vm790, %v1613, %v1607
    %s1616 = scalar_lea.vmem [#allocation5], 32
    %v1617 = vld [vmem:[%s1616] sm:$0xff]
    %v1618 = vld [vmem:[%s1616 + $0x8] sm:$0xff]
    %v1619 = vld [vmem:[%s1616 + $0x10] sm:$0xff]
    %v1620 = vld [vmem:[%s1616 + $0x18] sm:$0xff]
    %s1621 = scalar_lea.vmem %s9, 1
    %v1622 = vld [vmem:[%s1621] sm:$0x1]
    %v1624 = vperm.slane %v1622, 0
    %v1627 = vsel %vm202, %v1614, 0
    %v1630 = vsel %vm202, %v1615, 0
    %1632 = vmatpush.msra.mxu0 0.0
    %1633 = vmatpush.msra.mxu0 0.0
    %1634 = vmatpush.msra.mxu0 0.0
    %1635 = vmatpush.msra.mxu0 0.0
    %1636 = vmatpush.msra.mxu0 0.0
    %1637 = vmatpush.msra.mxu0 0.0
    %1638 = vmatpush.msra.mxu0 0.0
    %1639 = vmatpush.msra.mxu0 0.0
    %1640 = vmatpush.msra.mxu0 0.0
    %1641 = vmatpush.msra.mxu0 0.0
    %1642 = vmatpush.msra.mxu0 0.0
    %1643 = vmatpush.msra.mxu0 0.0
    %1644 = vmatpush.msra.mxu0 %v1620
    %1645 = vmatpush.msra.mxu0 %v1619
    %1646 = vmatpush.msra.mxu0 %v1618
    %1647 = vmatpush.msra.mxu0 %v1617
    %1648 = vmatmul.f32.gmra.mxu0 %v1627
    %v1649 = vpop.f32.mrf.mxu0
    %v1650 = vadd.f32 %v1624, %v1649
    %1651 = vmatmul.f32.gmra.mxu0 %v1630
    %v1652 = vpop.f32.mrf.mxu0
    %v1653 = vadd.f32 %v1624, %v1652
    %1654 = vdwg.mxu0
    %v1655 = vadd.f32 %v1023, %v1650
    %v1656 = vadd.f32 %v1024, %v1653
    %s1657 = scalar_lea.vmem %s10, 1
    %v1658 = vld [vmem:[%s1657] sm:$0x1]
    %v1660 = vperm.slane %v1658, 0
    %v1662 = vmul.f32 %v1655, %v1660
    %v1663 = vmul.f32 %v1656, %v1660
    %s1664 = scalar_lea.vmem %s11, 1
    %v1665 = vld [vmem:[%s1664] sm:$0x1]
    %v1667 = vperm.slane %v1665, 0
    %v1669 = vadd.f32 %v1662, %v1667
    %v1670 = vadd.f32 %v1663, %v1667
    %s1671 = scalar_lea.vmem [#allocation7], 32
    %v1672 = vld [vmem:[%s1671] sm:$0xff]
    %v1673 = vld [vmem:[%s1671 + $0x8] sm:$0xff]
    %v1674 = vld [vmem:[%s1671 + $0x10] sm:$0xff]
    %v1675 = vld [vmem:[%s1671 + $0x18] sm:$0xff]
    %s1676 = scalar_lea.vmem %s13, 1
    %v1677 = vld [vmem:[%s1676] sm:$0x1]
    %v1679 = vperm.slane %v1677, 0
    %v1682 = vsel %vm202, %v1669, 0
    %v1685 = vsel %vm202, %v1670, 0
    %1687 = vmatpush.msra.mxu0 0.0
    %1688 = vmatpush.msra.mxu0 0.0
    %1689 = vmatpush.msra.mxu0 0.0
    %1690 = vmatpush.msra.mxu0 0.0
    %1691 = vmatpush.msra.mxu0 0.0
    %1692 = vmatpush.msra.mxu0 0.0
    %1693 = vmatpush.msra.mxu0 0.0
    %1694 = vmatpush.msra.mxu0 0.0
    %1695 = vmatpush.msra.mxu0 0.0
    %1696 = vmatpush.msra.mxu0 0.0
    %1697 = vmatpush.msra.mxu0 0.0
    %1698 = vmatpush.msra.mxu0 0.0
    %1699 = vmatpush.msra.mxu0 %v1675
    %1700 = vmatpush.msra.mxu0 %v1674
    %1701 = vmatpush.msra.mxu0 %v1673
    %1702 = vmatpush.msra.mxu0 %v1672
    %1703 = vmatmul.f32.gmra.mxu0 %v1682
    %v1704 = vpop.f32.mrf.mxu0
    %v1705 = vadd.f32 %v1679, %v1704
    %1706 = vmatmul.f32.gmra.mxu0 %v1685
    %v1707 = vpop.f32.mrf.mxu0
    %v1708 = vadd.f32 %v1679, %v1707
    %1709 = vdwg.mxu0
    %v1710 = vmul.f32 %v1705, 0.5
    %v1711 = vmul.f32 %v1708, 0.5
    %v1712 = vmul.f32 %v1705, 0.70710677
    %v1713 = vmul.f32 %v1708, 0.70710677
    %v1714 = vmul.f32 %v1712, %v1712
    %v1715 = vmin.f32 16.0, %v1714
    %v1716 = vmul.f32 %v1715, 2.1237322e-06
    %v1717 = vadd.f32 %v1716, 0.00028619796
    %v1718 = vmul.f32 %v1715, %v1717
    %v1719 = vadd.f32 %v1718, 0.0036580483
    %v1720 = vmul.f32 %v1715, %v1719
    %v1721 = vadd.f32 %v1720, 0.05243302
    %v1722 = vmul.f32 %v1715, %v1721
    %v1723 = vadd.f32 %v1722, 0.18741608
    %v1724 = vmul.f32 %v1715, %v1723
    %v1725 = vadd.f32 %v1724, 1.1283791
    %v1726 = vmul.f32 %v1712, %v1725
    %v1727 = vmul.f32 %v1715, 3.8918573e-05
    %v1728 = vadd.f32 %v1727, 0.001143296
    %v1729 = vmul.f32 %v1715, %v1728
    %v1730 = vadd.f32 %v1729, 0.014752088
    %v1731 = vmul.f32 %v1715, %v1730
    %v1732 = vadd.f32 %v1731, 0.112945676
    %v1733 = vmul.f32 %v1715, %v1732
    %v1734 = vadd.f32 %v1733, 0.4994258
    %v1735 = vmul.f32 %v1715, %v1734
    %v1736 = vadd.f32 %v1735, 1.0
    %v1737 = vrcp.pop %v1736
    %v1738 = vmul.f32 %v1736, %v1737
    %v1739 = vsub.f32 1.0, %v1738
    %v1740 = vmul.f32 %v1737, %v1739
    %v1741 = vadd.f32 %v1737, %v1740
    %vm1742 = vweird.f32 %v1736
    %vm1743 = vweird.f32 %v1737
    %vm1744 = vmor %vm1742, %vm1743
    %v1745 = vsel %vm1744, %v1737, %v1741
    %v1746 = vand.u32 2147483647, %v1736
    %vm1747 = vcmp.eq.f32.partialorder %v1746, 8.507059e+37
    %v1748 = vand.u32 %v1736, 2147483648
    %v1749 = vor.u32 1.1754944e-38, %v1748
    %v1750 = vsel %vm1747, %v1749, %v1745
    %v1751 = vmul.f32 %v1726, %v1750
    %v1752 = vmin.f32 %v1751, 1.0
    %v1753 = vmax.f32 %v1752, -1.0
    %v1754 = vmul.f32 %v1713, %v1713
    %v1755 = vmin.f32 16.0, %v1754
    %v1756 = vmul.f32 %v1755, 2.1237322e-06
    %v1757 = vadd.f32 %v1756, 0.00028619796
    %v1758 = vmul.f32 %v1755, %v1757
    %v1759 = vadd.f32 %v1758, 0.0036580483
    %v1760 = vmul.f32 %v1755, %v1759
    %v1761 = vadd.f32 %v1760, 0.05243302
    %v1762 = vmul.f32 %v1755, %v1761
    %v1763 = vadd.f32 %v1762, 0.18741608
    %v1764 = vmul.f32 %v1755, %v1763
    %v1765 = vadd.f32 %v1764, 1.1283791
    %v1766 = vmul.f32 %v1713, %v1765
    %v1767 = vmul.f32 %v1755, 3.8918573e-05
    %v1768 = vadd.f32 %v1767, 0.001143296
    %v1769 = vmul.f32 %v1755, %v1768
    %v1770 = vadd.f32 %v1769, 0.014752088
    %v1771 = vmul.f32 %v1755, %v1770
    %v1772 = vadd.f32 %v1771, 0.112945676
    %v1773 = vmul.f32 %v1755, %v1772
    %v1774 = vadd.f32 %v1773, 0.4994258
    %v1775 = vmul.f32 %v1755, %v1774
    %v1776 = vadd.f32 %v1775, 1.0
    %v1777 = vrcp.pop %v1776
    %v1778 = vmul.f32 %v1776, %v1777
    %v1779 = vsub.f32 1.0, %v1778
    %v1780 = vmul.f32 %v1777, %v1779
    %v1781 = vadd.f32 %v1777, %v1780
    %vm1782 = vweird.f32 %v1776
    %vm1783 = vweird.f32 %v1777
    %vm1784 = vmor %vm1782, %vm1783
    %v1785 = vsel %vm1784, %v1777, %v1781
    %v1786 = vand.u32 2147483647, %v1776
    %vm1787 = vcmp.eq.f32.partialorder %v1786, 8.507059e+37
    %v1788 = vand.u32 %v1776, 2147483648
    %v1789 = vor.u32 1.1754944e-38, %v1788
    %v1790 = vsel %vm1787, %v1789, %v1785
    %v1791 = vmul.f32 %v1766, %v1790
    %v1792 = vmin.f32 %v1791, 1.0
    %v1793 = vmax.f32 %v1792, -1.0
    %v1794 = vadd.f32 %v1753, 1.0
    %v1795 = vadd.f32 %v1793, 1.0
    %v1796 = vmul.f32 %v1710, %v1794
    %v1797 = vmul.f32 %v1711, %v1795
    %s1798 = scalar_lea.vmem [#allocation8], 64
    %v1799 = vld [vmem:[%s1798] sm:$0xff]
    %v1800 = vld [vmem:[%s1798 + $0x8] sm:$0xff]
    %v1801 = vld [vmem:[%s1798 + $0x10] sm:$0xff]
    %v1802 = vld [vmem:[%s1798 + $0x18] sm:$0xff]
    %v1803 = vld [vmem:[%s1798 + $0x20] sm:$0xff]
    %v1804 = vld [vmem:[%s1798 + $0x28] sm:$0xff]
    %v1805 = vld [vmem:[%s1798 + $0x30] sm:$0xff]
    %v1806 = vld [vmem:[%s1798 + $0x38] sm:$0xff]
    %s1807 = scalar_lea.vmem %s15, 1
    %v1808 = vld [vmem:[%s1807] sm:$0x1]
    %v1810 = vperm.slane %v1808, 0
    %v1813 = vsel %vm981, %v1796, 0
    %v1816 = vsel %vm981, %v1797, 0
    %1818 = vmatpush.msra.mxu0 0.0
    %1819 = vmatpush.msra.mxu0 0.0
    %1820 = vmatpush.msra.mxu0 0.0
    %1821 = vmatpush.msra.mxu0 0.0
    %1822 = vmatpush.msra.mxu0 0.0
    %1823 = vmatpush.msra.mxu0 0.0
    %1824 = vmatpush.msra.mxu0 0.0
    %1825 = vmatpush.msra.mxu0 0.0
    %1826 = vmatpush.msra.mxu0 %v1806
    %1827 = vmatpush.msra.mxu0 %v1805
    %1828 = vmatpush.msra.mxu0 %v1804
    %1829 = vmatpush.msra.mxu0 %v1803
    %1830 = vmatpush.msra.mxu0 %v1802
    %1831 = vmatpush.msra.mxu0 %v1801
    %1832 = vmatpush.msra.mxu0 %v1800
    %1833 = vmatpush.msra.mxu0 %v1799
    %1834 = vmatmul.f32.gmra.mxu0 %v1813
    %v1835 = vpop.f32.mrf.mxu0
    %v1836 = vadd.f32 %v1810, %v1835
    %1837 = vmatmul.f32.gmra.mxu0 %v1816
    %v1838 = vpop.f32.mrf.mxu0
    %v1839 = vadd.f32 %v1810, %v1838
    %1840 = vdwg.mxu0
    %v1841 = vadd.f32 %v1669, %v1836
    %v1842 = vadd.f32 %v1670, %v1839
    %s1843 = scalar_lea.vmem %s16, 1
    %v1844 = vld [vmem:[%s1843] sm:$0x1]
    %v1846 = vperm.slane %v1844, 0
    %v1848 = vmul.f32 %v1841, %v1846
    %v1849 = vmul.f32 %v1842, %v1846
    %s1850 = scalar_lea.vmem %s17, 1
    %v1851 = vld [vmem:[%s1850] sm:$0x1]
    %v1853 = vperm.slane %v1851, 0
    %v1855 = vadd.f32 %v1848, %v1853
    %v1856 = vadd.f32 %v1849, %v1853
    %v1857 = vmul.f32 %v1855, 0.5
    %v1858 = vmul.f32 %v1856, 0.5
    %v1859 = vmul.f32 %v1855, 0.70710677
    %v1860 = vmul.f32 %v1856, 0.70710677
    %v1861 = vmul.f32 %v1859, %v1859
    %v1862 = vmin.f32 16.0, %v1861
    %v1863 = vmul.f32 %v1862, 2.1237322e-06
    %v1864 = vadd.f32 %v1863, 0.00028619796
    %v1865 = vmul.f32 %v1862, %v1864
    %v1866 = vadd.f32 %v1865, 0.0036580483
    %v1867 = vmul.f32 %v1862, %v1866
    %v1868 = vadd.f32 %v1867, 0.05243302
    %v1869 = vmul.f32 %v1862, %v1868
    %v1870 = vadd.f32 %v1869, 0.18741608
    %v1871 = vmul.f32 %v1862, %v1870
    %v1872 = vadd.f32 %v1871, 1.1283791
    %v1873 = vmul.f32 %v1859, %v1872
    %v1874 = vmul.f32 %v1862, 3.8918573e-05
    %v1875 = vadd.f32 %v1874, 0.001143296
    %v1876 = vmul.f32 %v1862, %v1875
    %v1877 = vadd.f32 %v1876, 0.014752088
    %v1878 = vmul.f32 %v1862, %v1877
    %v1879 = vadd.f32 %v1878, 0.112945676
    %v1880 = vmul.f32 %v1862, %v1879
    %v1881 = vadd.f32 %v1880, 0.4994258
    %v1882 = vmul.f32 %v1862, %v1881
    %v1883 = vadd.f32 %v1882, 1.0
    %v1884 = vrcp.pop %v1883
    %v1885 = vmul.f32 %v1883, %v1884
    %v1886 = vsub.f32 1.0, %v1885
    %v1887 = vmul.f32 %v1884, %v1886
    %v1888 = vadd.f32 %v1884, %v1887
    %vm1889 = vweird.f32 %v1883
    %vm1890 = vweird.f32 %v1884
    %vm1891 = vmor %vm1889, %vm1890
    %v1892 = vsel %vm1891, %v1884, %v1888
    %v1893 = vand.u32 2147483647, %v1883
    %vm1894 = vcmp.eq.f32.partialorder %v1893, 8.507059e+37
    %v1895 = vand.u32 %v1883, 2147483648
    %v1896 = vor.u32 1.1754944e-38, %v1895
    %v1897 = vsel %vm1894, %v1896, %v1892
    %v1898 = vmul.f32 %v1873, %v1897
    %v1899 = vmin.f32 %v1898, 1.0
    %v1900 = vmax.f32 %v1899, -1.0
    %v1901 = vmul.f32 %v1860, %v1860
    %v1902 = vmin.f32 16.0, %v1901
    %v1903 = vmul.f32 %v1902, 2.1237322e-06
    %v1904 = vadd.f32 %v1903, 0.00028619796
    %v1905 = vmul.f32 %v1902, %v1904
    %v1906 = vadd.f32 %v1905, 0.0036580483
    %v1907 = vmul.f32 %v1902, %v1906
    %v1908 = vadd.f32 %v1907, 0.05243302
    %v1909 = vmul.f32 %v1902, %v1908
    %v1910 = vadd.f32 %v1909, 0.18741608
    %v1911 = vmul.f32 %v1902, %v1910
    %v1912 = vadd.f32 %v1911, 1.1283791
    %v1913 = vmul.f32 %v1860, %v1912
    %v1914 = vmul.f32 %v1902, 3.8918573e-05
    %v1915 = vadd.f32 %v1914, 0.001143296
    %v1916 = vmul.f32 %v1902, %v1915
    %v1917 = vadd.f32 %v1916, 0.014752088
    %v1918 = vmul.f32 %v1902, %v1917
    %v1919 = vadd.f32 %v1918, 0.112945676
    %v1920 = vmul.f32 %v1902, %v1919
    %v1921 = vadd.f32 %v1920, 0.4994258
    %v1922 = vmul.f32 %v1902, %v1921
    %v1923 = vadd.f32 %v1922, 1.0
    %v1924 = vrcp.pop %v1923
    %v1925 = vmul.f32 %v1923, %v1924
    %v1926 = vsub.f32 1.0, %v1925
    %v1927 = vmul.f32 %v1924, %v1926
    %v1928 = vadd.f32 %v1924, %v1927
    %vm1929 = vweird.f32 %v1923
    %vm1930 = vweird.f32 %v1924
    %vm1931 = vmor %vm1929, %vm1930
    %v1932 = vsel %vm1931, %v1924, %v1928
    %v1933 = vand.u32 2147483647, %v1923
    %vm1934 = vcmp.eq.f32.partialorder %v1933, 8.507059e+37
    %v1935 = vand.u32 %v1923, 2147483648
    %v1936 = vor.u32 1.1754944e-38, %v1935
    %v1937 = vsel %vm1934, %v1936, %v1932
    %v1938 = vmul.f32 %v1913, %v1937
    %v1939 = vmin.f32 %v1938, 1.0
    %v1940 = vmax.f32 %v1939, -1.0
    %v1941 = vadd.f32 %v1900, 1.0
    %v1942 = vadd.f32 %v1940, 1.0
    %v1943 = vmul.f32 %v1857, %v1941
    %v1944 = vmul.f32 %v1858, %v1942
    %v1945 = vld [vmem:[%s2] sm:$0xff]
    %v1946 = vld [vmem:[%s2 + $0x8] sm:$0xff]
    %1948 = vset.pattern.permute.xlu0 0
    %1949 = vperm.xlu0 %1948, %v1945
    %v1950 = vpop.permute.xlu0 %1949
    %1953 = vset.pattern.permute.xlu0 0
    %1954 = vperm.xlu0 %1953, %v1946
    %v1955 = vpop.permute.xlu0 %1954
    %v1957 = vmul.f32 %v1943, %v1950
    %v1958 = vmul.f32 %v1944, %v1955
    %v1959 = vld [vmem:[#allocation10] sm:$0xff]
    %v1960 = vld [vmem:[#allocation10 + $0x8] sm:$0xff]
    %v1961 = vld [vmem:[#allocation10 + $0x10] sm:$0xff]
    %v1962 = vld [vmem:[#allocation10 + $0x18] sm:$0xff]
    %s1963 = scalar_lea.vmem [#allocation10], 32
    %v1964 = vld [vmem:[%s1963] sm:$0xff]
    %v1965 = vld [vmem:[%s1963 + $0x8] sm:$0xff]
    %v1966 = vld [vmem:[%s1963 + $0x10] sm:$0xff]
    %v1967 = vld [vmem:[%s1963 + $0x18] sm:$0xff]
    %v1970 = vrot.slane %v1957, 1
    %vm1971 = vcmask 1041409
    %v1972 = vsel %vm1971, %v1958, %v1970
    %v1973 = vsel %vm202, %v1972, 0
    %1975 = vmatpush.msra.mxu0 0.0
    %1976 = vmatpush.msra.mxu0 0.0
    %1977 = vmatpush.msra.mxu0 0.0
    %1978 = vmatpush.msra.mxu0 0.0
    %1979 = vmatpush.msra.mxu0 0.0
    %1980 = vmatpush.msra.mxu0 0.0
    %1981 = vmatpush.msra.mxu0 0.0
    %1982 = vmatpush.msra.mxu0 0.0
    %1983 = vmatpush.msra.mxu0 0.0
    %1984 = vmatpush.msra.mxu0 0.0
    %1985 = vmatpush.msra.mxu0 0.0
    %1986 = vmatpush.msra.mxu0 0.0
    %1987 = vmatpush.msra.mxu0 %v1967
    %1988 = vmatpush.msra.mxu0 %v1966
    %1989 = vmatpush.msra.mxu0 %v1965
    %1990 = vmatpush.msra.mxu0 %v1964
    %1991 = vmatmul.f32.gmra.mxu0 %v1973
    %v1992 = vpop.f32.mrf.mxu0
    %v1993 = vadd.f32 0.0, %v1992
    %1994 = vdwg.mxu0
    %v1995 = vrot.slane %v1958, 7
    %v1996 = vsel %vm1971, %v1995, %v1957
    %v1997 = vsel %vm202, %v1996, 0
    %1999 = vmatpush.msra.mxu0 0.0
    %2000 = vmatpush.msra.mxu0 0.0
    %2001 = vmatpush.msra.mxu0 0.0
    %2002 = vmatpush.msra.mxu0 0.0
    %2003 = vmatpush.msra.mxu0 0.0
    %2004 = vmatpush.msra.mxu0 0.0
    %2005 = vmatpush.msra.mxu0 0.0
    %2006 = vmatpush.msra.mxu0 0.0
    %2007 = vmatpush.msra.mxu0 0.0
    %2008 = vmatpush.msra.mxu0 0.0
    %2009 = vmatpush.msra.mxu0 0.0
    %2010 = vmatpush.msra.mxu0 0.0
    %2011 = vmatpush.msra.mxu0 %v1962
    %2012 = vmatpush.msra.mxu0 %v1961
    %2013 = vmatpush.msra.mxu0 %v1960
    %2014 = vmatpush.msra.mxu0 %v1959
    %2015 = vmatmul.f32.gmra.mxu0 %v1997
    %v2016 = vpop.f32.mrf.mxu0
    %v2017 = vadd.f32 %v1993, %v2016
    %2018 = vdwg.mxu0
    %s2019 = scalar_lea.vmem [#allocation10], 64
    %v2020 = vld [vmem:[%s2019] sm:$0xff]
    %v2021 = vld [vmem:[%s2019 + $0x8] sm:$0xff]
    %v2022 = vld [vmem:[%s2019 + $0x10] sm:$0xff]
    %v2023 = vld [vmem:[%s2019 + $0x18] sm:$0xff]
    %v2024 = vrot.slane %v1957, 2
    %v2025 = vrot.slane %v1958, 1
    %v2026 = vsel %vm1971, %v2025, %v2024
    %v2027 = vsel %vm202, %v2026, 0
    %2029 = vmatpush.msra.mxu0 0.0
    %2030 = vmatpush.msra.mxu0 0.0
    %2031 = vmatpush.msra.mxu0 0.0
    %2032 = vmatpush.msra.mxu0 0.0
    %2033 = vmatpush.msra.mxu0 0.0
    %2034 = vmatpush.msra.mxu0 0.0
    %2035 = vmatpush.msra.mxu0 0.0
    %2036 = vmatpush.msra.mxu0 0.0
    %2037 = vmatpush.msra.mxu0 0.0
    %2038 = vmatpush.msra.mxu0 0.0
    %2039 = vmatpush.msra.mxu0 0.0
    %2040 = vmatpush.msra.mxu0 0.0
    %2041 = vmatpush.msra.mxu0 %v2023
    %2042 = vmatpush.msra.mxu0 %v2022
    %2043 = vmatpush.msra.mxu0 %v2021
    %2044 = vmatpush.msra.mxu0 %v2020
    %2045 = vmatmul.f32.gmra.mxu0 %v2027
    %v2046 = vpop.f32.mrf.mxu0
    %v2047 = vadd.f32 0.0, %v2046
    %2048 = vdwg.mxu0
    %v2049 = vadd.f32 %v2017, %v2047
    %s2050 = scalar_lea.vmem [#allocation10], 96
    %v2051 = vld [vmem:[%s2050] sm:$0xff]
    %v2052 = vld [vmem:[%s2050 + $0x8] sm:$0xff]
    %v2053 = vld [vmem:[%s2050 + $0x10] sm:$0xff]
    %v2054 = vld [vmem:[%s2050 + $0x18] sm:$0xff]
    %v2055 = vrot.slane %v1957, 3
    %v2056 = vrot.slane %v1958, 2
    %v2057 = vsel %vm1971, %v2056, %v2055
    %v2058 = vsel %vm202, %v2057, 0
    %2060 = vmatpush.msra.mxu0 0.0
    %2061 = vmatpush.msra.mxu0 0.0
    %2062 = vmatpush.msra.mxu0 0.0
    %2063 = vmatpush.msra.mxu0 0.0
    %2064 = vmatpush.msra.mxu0 0.0
    %2065 = vmatpush.msra.mxu0 0.0
    %2066 = vmatpush.msra.mxu0 0.0
    %2067 = vmatpush.msra.mxu0 0.0
    %2068 = vmatpush.msra.mxu0 0.0
    %2069 = vmatpush.msra.mxu0 0.0
    %2070 = vmatpush.msra.mxu0 0.0
    %2071 = vmatpush.msra.mxu0 0.0
    %2072 = vmatpush.msra.mxu0 %v2054
    %2073 = vmatpush.msra.mxu0 %v2053
    %2074 = vmatpush.msra.mxu0 %v2052
    %2075 = vmatpush.msra.mxu0 %v2051
    %2076 = vmatmul.f32.gmra.mxu0 %v2058
    %v2077 = vpop.f32.mrf.mxu0
    %v2078 = vadd.f32 0.0, %v2077
    %2079 = vdwg.mxu0
    %v2080 = vadd.f32 %v2049, %v2078
    %s2081 = scalar_lea.vmem [#allocation10], 128
    %v2082 = vld [vmem:[%s2081] sm:$0xff]
    %v2083 = vld [vmem:[%s2081 + $0x8] sm:$0xff]
    %v2084 = vld [vmem:[%s2081 + $0x10] sm:$0xff]
    %v2085 = vld [vmem:[%s2081 + $0x18] sm:$0xff]
    %v2086 = vrot.slane %v1957, 4
    %v2087 = vrot.slane %v1958, 3
    %v2088 = vsel %vm1971, %v2087, %v2086
    %v2089 = vsel %vm202, %v2088, 0
    %2091 = vmatpush.msra.mxu0 0.0
    %2092 = vmatpush.msra.mxu0 0.0
    %2093 = vmatpush.msra.mxu0 0.0
    %2094 = vmatpush.msra.mxu0 0.0
    %2095 = vmatpush.msra.mxu0 0.0
    %2096 = vmatpush.msra.mxu0 0.0
    %2097 = vmatpush.msra.mxu0 0.0
    %2098 = vmatpush.msra.mxu0 0.0
    %2099 = vmatpush.msra.mxu0 0.0
    %2100 = vmatpush.msra.mxu0 0.0
    %2101 = vmatpush.msra.mxu0 0.0
    %2102 = vmatpush.msra.mxu0 0.0
    %2103 = vmatpush.msra.mxu0 %v2085
    %2104 = vmatpush.msra.mxu0 %v2084
    %2105 = vmatpush.msra.mxu0 %v2083
    %2106 = vmatpush.msra.mxu0 %v2082
    %2107 = vmatmul.f32.gmra.mxu0 %v2089
    %v2108 = vpop.f32.mrf.mxu0
    %v2109 = vadd.f32 0.0, %v2108
    %2110 = vdwg.mxu0
    %v2111 = vadd.f32 %v2080, %v2109
    %s2112 = scalar_lea.vmem [#allocation10], 160
    %v2113 = vld [vmem:[%s2112] sm:$0xff]
    %v2114 = vld [vmem:[%s2112 + $0x8] sm:$0xff]
    %v2115 = vld [vmem:[%s2112 + $0x10] sm:$0xff]
    %v2116 = vld [vmem:[%s2112 + $0x18] sm:$0xff]
    %v2117 = vrot.slane %v1957, 5
    %v2118 = vrot.slane %v1958, 4
    %v2119 = vsel %vm1971, %v2118, %v2117
    %v2120 = vsel %vm202, %v2119, 0
    %2122 = vmatpush.msra.mxu0 0.0
    %2123 = vmatpush.msra.mxu0 0.0
    %2124 = vmatpush.msra.mxu0 0.0
    %2125 = vmatpush.msra.mxu0 0.0
    %2126 = vmatpush.msra.mxu0 0.0
    %2127 = vmatpush.msra.mxu0 0.0
    %2128 = vmatpush.msra.mxu0 0.0
    %2129 = vmatpush.msra.mxu0 0.0
    %2130 = vmatpush.msra.mxu0 0.0
    %2131 = vmatpush.msra.mxu0 0.0
    %2132 = vmatpush.msra.mxu0 0.0
    %2133 = vmatpush.msra.mxu0 0.0
    %2134 = vmatpush.msra.mxu0 %v2116
    %2135 = vmatpush.msra.mxu0 %v2115
    %2136 = vmatpush.msra.mxu0 %v2114
    %2137 = vmatpush.msra.mxu0 %v2113
    %2138 = vmatmul.f32.gmra.mxu0 %v2120
    %v2139 = vpop.f32.mrf.mxu0
    %v2140 = vadd.f32 0.0, %v2139
    %2141 = vdwg.mxu0
    %v2142 = vadd.f32 %v2111, %v2140
    %s2143 = scalar_lea.vmem [#allocation10], 192
    %v2144 = vld [vmem:[%s2143] sm:$0xff]
    %v2145 = vld [vmem:[%s2143 + $0x8] sm:$0xff]
    %v2146 = vld [vmem:[%s2143 + $0x10] sm:$0xff]
    %v2147 = vld [vmem:[%s2143 + $0x18] sm:$0xff]
    %v2148 = vrot.slane %v1957, 6
    %v2149 = vrot.slane %v1958, 5
    %v2150 = vsel %vm1971, %v2149, %v2148
    %v2151 = vsel %vm202, %v2150, 0
    %2153 = vmatpush.msra.mxu0 0.0
    %2154 = vmatpush.msra.mxu0 0.0
    %2155 = vmatpush.msra.mxu0 0.0
    %2156 = vmatpush.msra.mxu0 0.0
    %2157 = vmatpush.msra.mxu0 0.0
    %2158 = vmatpush.msra.mxu0 0.0
    %2159 = vmatpush.msra.mxu0 0.0
    %2160 = vmatpush.msra.mxu0 0.0
    %2161 = vmatpush.msra.mxu0 0.0
    %2162 = vmatpush.msra.mxu0 0.0
    %2163 = vmatpush.msra.mxu0 0.0
    %2164 = vmatpush.msra.mxu0 0.0
    %2165 = vmatpush.msra.mxu0 %v2147
    %2166 = vmatpush.msra.mxu0 %v2146
    %2167 = vmatpush.msra.mxu0 %v2145
    %2168 = vmatpush.msra.mxu0 %v2144
    %2169 = vmatmul.f32.gmra.mxu0 %v2151
    %v2170 = vpop.f32.mrf.mxu0
    %v2171 = vadd.f32 0.0, %v2170
    %2172 = vdwg.mxu0
    %v2173 = vadd.f32 %v2142, %v2171
    %s2174 = scalar_lea.vmem [#allocation10], 224
    %v2175 = vld [vmem:[%s2174] sm:$0xff]
    %v2176 = vld [vmem:[%s2174 + $0x8] sm:$0xff]
    %v2177 = vld [vmem:[%s2174 + $0x10] sm:$0xff]
    %v2178 = vld [vmem:[%s2174 + $0x18] sm:$0xff]
    %v2179 = vrot.slane %v1957, 7
    %v2180 = vrot.slane %v1958, 6
    %v2181 = vsel %vm1971, %v2180, %v2179
    %v2182 = vsel %vm202, %v2181, 0
    %2184 = vmatpush.msra.mxu0 0.0
    %2185 = vmatpush.msra.mxu0 0.0
    %2186 = vmatpush.msra.mxu0 0.0
    %2187 = vmatpush.msra.mxu0 0.0
    %2188 = vmatpush.msra.mxu0 0.0
    %2189 = vmatpush.msra.mxu0 0.0
    %2190 = vmatpush.msra.mxu0 0.0
    %2191 = vmatpush.msra.mxu0 0.0
    %2192 = vmatpush.msra.mxu0 0.0
    %2193 = vmatpush.msra.mxu0 0.0
    %2194 = vmatpush.msra.mxu0 0.0
    %2195 = vmatpush.msra.mxu0 0.0
    %2196 = vmatpush.msra.mxu0 %v2178
    %2197 = vmatpush.msra.mxu0 %v2177
    %2198 = vmatpush.msra.mxu0 %v2176
    %2199 = vmatpush.msra.mxu0 %v2175
    %2200 = vmatmul.f32.gmra.mxu0 %v2182
    %v2201 = vpop.f32.mrf.mxu0
    %v2202 = vadd.f32 0.0, %v2201
    %2203 = vdwg.mxu0
    %v2204 = vadd.f32 %v2173, %v2202
    %v2205 = vld [vmem:[%s19] sm:$0x1]
    %v2207 = vperm.slane %v2205, 0
    %v2209 = vadd.f32 %v2204, %v2207
    %2210 = vst [vmem:[#allocation11] sm:$0x3] %v2209
    // Predicated region
    $region102: #{_lambda_.1} parent=1 // pred_check
      _
    $region103: #{_lambda_.1} parent=1 // pred_check_branch
      %2212 = sbr.rel (0) target = $region105
    $region104: #{_lambda_.1} parent=1 // pred_region
      %2214 = vsyncadd [#allocation4], 0
      %s2216 = sshll.u32 [#allocation11], 4
      %s2217 = int_to_ptr.vmem [resolvable:$true] %s2216
      %s2218 = sshll.u32 %s20, 4
      %s2219 = int_to_ptr.hbm [resolvable:$true] %s2218
      %2221 = dma.vmem_to_hbm [thread:$0]  %s2217, 32, %s2219, [#allocation4]
    $region105: #{_lambda_.1} parent=1 // pred_fallthru
      _
    // Predicated region
    $region106: #{_lambda_.1} parent=1 // pred_check
      _
    $region107: #{_lambda_.1} parent=1 // pred_check_branch
      %2223 = sbr.rel (0) target = $region109
    $region108: #{_lambda_.1} parent=1 // pred_region
      %2225 = dma.done [#allocation4], 32
    $region109: #{_lambda_.1} parent=1 // pred_fallthru
      _
    %2226 = vsyncpa [#allocation3], 1
    %2227 = vsyncpa [#allocation6], 1
    %2228 = vsyncpa [#allocation9], 1
    %2229 = vsyncpa [#allocation4], 1

</llo_original>
